<compile_context>
chip_gen: v5e
topology: v5e:2x2
jax: 0.10.0
libtpu: 0.0.40
codegen_flags: <defaults>
</compile_context>

<pallas_src>
from math import exp

import jax
import jax.numpy as jnp
import numpy as np
from jax.experimental import pallas as pl
from jax.experimental.pallas import tpu as pltpu

WINDOW_SIZE = 11
SIGMA = 1.5
C1 = 0.01 ** 2
C2 = 0.03 ** 2


def _gaussian_1d(window_size: int, sigma: float) -> np.ndarray:
    g = np.array(
        [exp(-((x - window_size // 2) ** 2) / float(2 * sigma ** 2))
         for x in range(window_size)],
        dtype=np.float32,
    )
    return g / g.sum()


def _conv_matrices_same(h: int, w: int, window_size: int):
    """Effective 'same'-conv (zero pad) Toeplitz matrices.

    R is (h, h) with R[i, r] = g[r - i + pad] (clipped at the borders) so
    R @ X applies the 1-D Gaussian along rows with zero padding.
    Cm is (w, w) with Cm[r, j] = g[r - j + pad] so X @ Cm applies it along
    columns.  Clipping the window at the border is exactly zero padding.
    """
    g = _gaussian_1d(window_size, SIGMA)
    pad = window_size // 2
    R = np.zeros((h, h), dtype=np.float32)
    for i in range(h):
        for t in range(window_size):
            r = i + t - pad
            if 0 <= r < h:
                R[i, r] += g[t]
    Cm = np.zeros((w, w), dtype=np.float32)
    for j in range(w):
        for t in range(window_size):
            r = j + t - pad
            if 0 <= r < w:
                Cm[r, j] += g[t]
    return R, Cm


def _ssim_kernel(r_ref, cm_ref, x1_ref, x2_ref, out_ref):
    # One grid step = `bt` batch elements, all channels fused on sublanes.
    bt, c, h, w = x1_ref.shape
    m = bt * c * h

    # Free merge of the leading (batch, channel, H) dims; W stays on lanes.
    # (H % 8 == 0 keeps this a pure relabeling of sublane tiles.)
    x1 = x1_ref[...].reshape(m, w)
    x2 = x2_ref[...].reshape(m, w)
    r = r_ref[...]
    cm = cm_ref[...]

    # Column (W) Gaussian pass for all slabs of all 5 terms: contraction on
    # the minor (lane) dim, plain (M,W)@(W,W) — no kron waste.
    col1 = jnp.dot(x1, cm, preferred_element_type=jnp.float32)
    col2 = jnp.dot(x2, cm, preferred_element_type=jnp.float32)
    col11 = jnp.dot(x1 * x1, cm, preferred_element_type=jnp.float32)
    col22 = jnp.dot(x2 * x2, cm, preferred_element_type=jnp.float32)
    col12 = jnp.dot(x1 * x2, cm, preferred_element_type=jnp.float32)

    # Row (H) Gaussian pass per (batch, channel) slab + SSIM map; accumulate
    # elementwise into one (H, W) tile so there is a single cross-lane
    # reduction per grid step (also bounds f32 accumulation error).
    acc = jnp.zeros((h, w), dtype=jnp.float32)
    for b in range(bt * c):                       # short unrolled loop
        lo = b * h                                # sublane-aligned static slice
        mu1 = jnp.dot(r, col1[lo:lo + h], preferred_element_type=jnp.float32)
        mu2 = jnp.dot(r, col2[lo:lo + h], preferred_element_type=jnp.float32)
        e11 = jnp.dot(r, col11[lo:lo + h], preferred_element_type=jnp.float32)
        e22 = jnp.dot(r, col22[lo:lo + h], preferred_element_type=jnp.float32)
        e12 = jnp.dot(r, col12[lo:lo + h], preferred_element_type=jnp.float32)

        mu1_sq = mu1 * mu1
        mu2_sq = mu2 * mu2
        mu1_mu2 = mu1 * mu2
        sigma1_sq = e11 - mu1_sq
        sigma2_sq = e22 - mu2_sq
        sigma12 = e12 - mu1_mu2

        num = (2.0 * mu1_mu2 + C1) * (2.0 * sigma12 + C2)
        den = (mu1_sq + mu2_sq + C1) * (sigma1_sq + sigma2_sq + C2)
        acc = acc + num / den

    partial = jnp.sum(acc)
    # Lane-dense unmasked (8,128) store; wrapper reads [:, 0, 0].
    out_ref[...] = jnp.full((1, 8, 128), partial, dtype=jnp.float32)


def _pick_batch_tile(n: int, c: int, h: int) -> int:
    """Fuse batch elements per grid step (amortize ~0.35us/step overhead at
    small H), but keep >=2 grid steps when possible (v7x megacore) and cap
    the per-step sublane extent."""
    best = 1
    for cand in range(1, n + 1):
        if n % cand:
            continue
        if cand * c * h > 1024:          # cap per-step sublane rows / VMEM
            break
        if n >= 2 and n // cand < 2:     # keep both TensorCores busy
            break
        best = cand
    return best


def _vmem_limit_bytes(bt: int, c: int, h: int, w: int) -> int:
    img_block = bt * c * h * w * 4
    consts = (h * h + w * w) * 4
    # 2 image inputs double-buffered + constants (double-buffered) + output.
    pipelined = 2 * 2 * img_block + 2 * consts + 2 * 8 * 128 * 4
    # In-kernel intermediates: x1, x2, 5 column-pass results, per-slab temps.
    intermediates = 9 * img_block + 8 * h * w * 4
    need = pipelined + intermediates + (2 << 20)   # compiler scratch slack
    # Clamp to something safe on every generation (v7x physical VMEM = 64 MiB).
    return int(min(max(need, 8 << 20), 56 << 20))


def ssim_loss_pallas(img1, img2, window_size=WINDOW_SIZE):
    """Equivalent of SSIM().forward(img1, img2) with size_average=True."""
    n, c, h, w = img1.shape

    r_np, cm_np = _conv_matrices_same(h, w, window_size)
    bt = _pick_batch_tile(n, c, h)
    g = n // bt

    img1 = img1.astype(jnp.float32)   # no-op when already f32
    img2 = img2.astype(jnp.float32)

    partials = pl.pallas_call(
        _ssim_kernel,
        out_shape=jax.ShapeDtypeStruct((g, 8, 128), jnp.float32),
        grid_spec=pltpu.PrefetchScalarGridSpec(
            num_scalar_prefetch=0,
            grid=(g,),
            in_specs=[
                pl.BlockSpec((h, h), lambda i: (0, 0)),          # R (row pass)
                pl.BlockSpec((w, w), lambda i: (0, 0)),          # Cm (col pass)
                pl.BlockSpec((bt, c, h, w), lambda i: (i, 0, 0, 0)),
                pl.BlockSpec((bt, c, h, w), lambda i: (i, 0, 0, 0)),
            ],
            out_specs=pl.BlockSpec((1, 8, 128), lambda i: (i, 0, 0)),
        ),
        compiler_params=pltpu.CompilerParams(
            dimension_semantics=("parallel",),
            vmem_limit_bytes=_vmem_limit_bytes(bt, c, h, w)),
    )(jnp.asarray(r_np), jnp.asarray(cm_np), img1, img2)

    total = jnp.sum(partials[:, 0, 0])
    mean_ssim = total / float(n * c * h * w)
    return -mean_ssim


def _ssim_reference(img1, img2, window_size=WINDOW_SIZE):
    """Pure-JAX reference reproducing the PyTorch code with lax.conv."""
    n, c, h, w = img1.shape
    pad = window_size // 2
    g = _gaussian_1d(window_size, SIGMA)
    win2d = np.outer(g, g).astype(np.float32)
    window = jnp.asarray(np.tile(win2d[None, None], (c, 1, 1, 1)))  # (C,1,ws,ws)

    def conv(x):
        return jax.lax.conv_general_dilated(
            x, window, window_strides=(1, 1),
            padding=[(pad, pad), (pad, pad)],
            feature_group_count=c,
            dimension_numbers=("NCHW", "OIHW", "NCHW"))

    mu1, mu2 = conv(img1), conv(img2)
    mu1_sq, mu2_sq, mu1_mu2 = mu1 * mu1, mu2 * mu2, mu1 * mu2
    sigma1_sq = conv(img1 * img1) - mu1_sq
    sigma2_sq = conv(img2 * img2) - mu2_sq
    sigma12 = conv(img1 * img2) - mu1_mu2
    ssim_map = ((2 * mu1_mu2 + C1) * (2 * sigma12 + C2)) / (
        (mu1_sq + mu2_sq + C1) * (sigma1_sq + sigma2_sq + C2))
    return -jnp.mean(ssim_map)


if __name__ == "__main__":
    key = jax.random.PRNGKey(0)
    k1, k2 = jax.random.split(key)
    img1 = jax.random.uniform(k1, (2, 4, 16, 16), dtype=jnp.float32)
    img2 = jax.random.uniform(k2, (2, 4, 16, 16), dtype=jnp.float32)

    out = ssim_loss_pallas(img1, img2)
    jax.block_until_ready(out)

    ref = _ssim_reference(img1, img2)
    assert np.allclose(np.asarray(out), np.asarray(ref), rtol=1e-4, atol=1e-5), (
        float(out), float(ref))
    print("KERNEL_OK")
</pallas_src>

<mosaic_0001>
module attributes {stable_mosaic.version = 11 : i64} {
  func.func @_ssim_kernel(%arg0: i32, %arg1: memref<16x16xf32, #tpu.memory_space<vmem>>, %arg2: memref<16x16xf32, #tpu.memory_space<vmem>>, %arg3: memref<1x4x16x16xf32, #tpu.memory_space<vmem>>, %arg4: memref<1x4x16x16xf32, #tpu.memory_space<vmem>>, %arg5: memref<1x8x128xf32, #tpu.memory_space<vmem>>) attributes {dimension_semantics = [#tpu.dimension_semantics<parallel>], iteration_bounds = array<i64: 2>, scalar_prefetch = 0 : i64, scratch_operands = 0 : i64, tpu.core_type = #tpu.core_type<tc>, window_params = [{pipeline_mode = #tpu.pipeline_mode<synchronous>, transform_indices = @transform_0, window_bounds = array<i64: 16, 16>}, {pipeline_mode = #tpu.pipeline_mode<synchronous>, transform_indices = @transform_1, window_bounds = array<i64: 16, 16>}, {transform_indices = @transform_2, window_bounds = array<i64: 1, 4, 16, 16>}, {transform_indices = @transform_3, window_bounds = array<i64: 1, 4, 16, 16>}, {transform_indices = @transform_4, window_bounds = array<i64: 1, 8, 128>}]} {
    %c0 = arith.constant 0 : index
    %c0_0 = arith.constant 0 : index
    %c0_1 = arith.constant 0 : index
    %c0_2 = arith.constant 0 : index
    %0 = vector.load %arg3[%c0, %c0_0, %c0_1, %c0_2] : memref<1x4x16x16xf32, #tpu.memory_space<vmem>>, vector<1x4x16x16xf32>
    %1 = vector.shape_cast %0 : vector<1x4x16x16xf32> to vector<64x16xf32>
    %c0_3 = arith.constant 0 : index
    %c0_4 = arith.constant 0 : index
    %c0_5 = arith.constant 0 : index
    %c0_6 = arith.constant 0 : index
    %2 = vector.load %arg4[%c0_3, %c0_4, %c0_5, %c0_6] : memref<1x4x16x16xf32, #tpu.memory_space<vmem>>, vector<1x4x16x16xf32>
    %3 = vector.shape_cast %2 : vector<1x4x16x16xf32> to vector<64x16xf32>
    %c0_7 = arith.constant 0 : index
    %c0_8 = arith.constant 0 : index
    %4 = vector.load %arg1[%c0_7, %c0_8] : memref<16x16xf32, #tpu.memory_space<vmem>>, vector<16x16xf32>
    %c0_9 = arith.constant 0 : index
    %c0_10 = arith.constant 0 : index
    %5 = vector.load %arg2[%c0_9, %c0_10] : memref<16x16xf32, #tpu.memory_space<vmem>>, vector<16x16xf32>
    %cst = arith.constant dense<0.000000e+00> : vector<64x16xf32>
    %6 = tpu.matmul %1, %5, %cst {dimension_numbers = #tpu.dot_dimension_numbers<[1], [0], [0], [1], [0, 0, 1, 1], [], []>} : vector<64x16xf32>, vector<16x16xf32>, vector<64x16xf32> -> vector<64x16xf32>
    %cst_11 = arith.constant dense<0.000000e+00> : vector<64x16xf32>
    %7 = tpu.matmul %3, %5, %cst_11 {dimension_numbers = #tpu.dot_dimension_numbers<[1], [0], [0], [1], [0, 0, 1, 1], [], []>} : vector<64x16xf32>, vector<16x16xf32>, vector<64x16xf32> -> vector<64x16xf32>
    %8 = arith.mulf %1, %1 : vector<64x16xf32>
    %cst_12 = arith.constant dense<0.000000e+00> : vector<64x16xf32>
    %9 = tpu.matmul %8, %5, %cst_12 {dimension_numbers = #tpu.dot_dimension_numbers<[1], [0], [0], [1], [0, 0, 1, 1], [], []>} : vector<64x16xf32>, vector<16x16xf32>, vector<64x16xf32> -> vector<64x16xf32>
    %10 = arith.mulf %3, %3 : vector<64x16xf32>
    %cst_13 = arith.constant dense<0.000000e+00> : vector<64x16xf32>
    %11 = tpu.matmul %10, %5, %cst_13 {dimension_numbers = #tpu.dot_dimension_numbers<[1], [0], [0], [1], [0, 0, 1, 1], [], []>} : vector<64x16xf32>, vector<16x16xf32>, vector<64x16xf32> -> vector<64x16xf32>
    %12 = arith.mulf %1, %3 : vector<64x16xf32>
    %cst_14 = arith.constant dense<0.000000e+00> : vector<64x16xf32>
    %13 = tpu.matmul %12, %5, %cst_14 {dimension_numbers = #tpu.dot_dimension_numbers<[1], [0], [0], [1], [0, 0, 1, 1], [], []>} : vector<64x16xf32>, vector<16x16xf32>, vector<64x16xf32> -> vector<64x16xf32>
    %cst_15 = arith.constant 0.000000e+00 : f32
    %14 = vector.broadcast %cst_15 : f32 to vector<16x16xf32>
    %15 = vector.extract_strided_slice %6 {offsets = [0, 0], sizes = [16, 16], strides = [1, 1]} : vector<64x16xf32> to vector<16x16xf32>
    %cst_16 = arith.constant dense<0.000000e+00> : vector<16x16xf32>
    %16 = tpu.matmul %4, %15, %cst_16 {dimension_numbers = #tpu.dot_dimension_numbers<[1], [0], [0], [1], [0, 0, 1, 1], [], []>} : vector<16x16xf32>, vector<16x16xf32>, vector<16x16xf32> -> vector<16x16xf32>
    %17 = vector.extract_strided_slice %7 {offsets = [0, 0], sizes = [16, 16], strides = [1, 1]} : vector<64x16xf32> to vector<16x16xf32>
    %cst_17 = arith.constant dense<0.000000e+00> : vector<16x16xf32>
    %18 = tpu.matmul %4, %17, %cst_17 {dimension_numbers = #tpu.dot_dimension_numbers<[1], [0], [0], [1], [0, 0, 1, 1], [], []>} : vector<16x16xf32>, vector<16x16xf32>, vector<16x16xf32> -> vector<16x16xf32>
    %19 = vector.extract_strided_slice %9 {offsets = [0, 0], sizes = [16, 16], strides = [1, 1]} : vector<64x16xf32> to vector<16x16xf32>
    %cst_18 = arith.constant dense<0.000000e+00> : vector<16x16xf32>
    %20 = tpu.matmul %4, %19, %cst_18 {dimension_numbers = #tpu.dot_dimension_numbers<[1], [0], [0], [1], [0, 0, 1, 1], [], []>} : vector<16x16xf32>, vector<16x16xf32>, vector<16x16xf32> -> vector<16x16xf32>
    %21 = vector.extract_strided_slice %11 {offsets = [0, 0], sizes = [16, 16], strides = [1, 1]} : vector<64x16xf32> to vector<16x16xf32>
    %cst_19 = arith.constant dense<0.000000e+00> : vector<16x16xf32>
    %22 = tpu.matmul %4, %21, %cst_19 {dimension_numbers = #tpu.dot_dimension_numbers<[1], [0], [0], [1], [0, 0, 1, 1], [], []>} : vector<16x16xf32>, vector<16x16xf32>, vector<16x16xf32> -> vector<16x16xf32>
    %23 = vector.extract_strided_slice %13 {offsets = [0, 0], sizes = [16, 16], strides = [1, 1]} : vector<64x16xf32> to vector<16x16xf32>
    %cst_20 = arith.constant dense<0.000000e+00> : vector<16x16xf32>
    %24 = tpu.matmul %4, %23, %cst_20 {dimension_numbers = #tpu.dot_dimension_numbers<[1], [0], [0], [1], [0, 0, 1, 1], [], []>} : vector<16x16xf32>, vector<16x16xf32>, vector<16x16xf32> -> vector<16x16xf32>
    %25 = arith.mulf %16, %16 : vector<16x16xf32>
    %26 = arith.mulf %18, %18 : vector<16x16xf32>
    %27 = arith.mulf %16, %18 : vector<16x16xf32>
    %28 = arith.subf %20, %25 : vector<16x16xf32>
    %29 = arith.subf %22, %26 : vector<16x16xf32>
    %30 = arith.subf %24, %27 : vector<16x16xf32>
    %cst_21 = arith.constant 2.000000e+00 : f32
    %31 = vector.broadcast %cst_21 : f32 to vector<16x16xf32>
    %32 = arith.mulf %31, %27 : vector<16x16xf32>
    %cst_22 = arith.constant 9.99999974E-5 : f32
    %33 = vector.broadcast %cst_22 : f32 to vector<16x16xf32>
    %34 = arith.addf %32, %33 : vector<16x16xf32>
    %cst_23 = arith.constant 2.000000e+00 : f32
    %35 = vector.broadcast %cst_23 : f32 to vector<16x16xf32>
    %36 = arith.mulf %35, %30 : vector<16x16xf32>
    %cst_24 = arith.constant 8.99999984E-4 : f32
    %37 = vector.broadcast %cst_24 : f32 to vector<16x16xf32>
    %38 = arith.addf %36, %37 : vector<16x16xf32>
    %39 = arith.mulf %34, %38 : vector<16x16xf32>
    %40 = arith.addf %25, %26 : vector<16x16xf32>
    %cst_25 = arith.constant 9.99999974E-5 : f32
    %41 = vector.broadcast %cst_25 : f32 to vector<16x16xf32>
    %42 = arith.addf %40, %41 : vector<16x16xf32>
    %43 = arith.addf %28, %29 : vector<16x16xf32>
    %cst_26 = arith.constant 8.99999984E-4 : f32
    %44 = vector.broadcast %cst_26 : f32 to vector<16x16xf32>
    %45 = arith.addf %43, %44 : vector<16x16xf32>
    %46 = arith.mulf %42, %45 : vector<16x16xf32>
    %47 = arith.divf %39, %46 : vector<16x16xf32>
    %48 = arith.addf %14, %47 : vector<16x16xf32>
    %49 = vector.extract_strided_slice %6 {offsets = [16, 0], sizes = [16, 16], strides = [1, 1]} : vector<64x16xf32> to vector<16x16xf32>
    %cst_27 = arith.constant dense<0.000000e+00> : vector<16x16xf32>
    %50 = tpu.matmul %4, %49, %cst_27 {dimension_numbers = #tpu.dot_dimension_numbers<[1], [0], [0], [1], [0, 0, 1, 1], [], []>} : vector<16x16xf32>, vector<16x16xf32>, vector<16x16xf32> -> vector<16x16xf32>
    %51 = vector.extract_strided_slice %7 {offsets = [16, 0], sizes = [16, 16], strides = [1, 1]} : vector<64x16xf32> to vector<16x16xf32>
    %cst_28 = arith.constant dense<0.000000e+00> : vector<16x16xf32>
    %52 = tpu.matmul %4, %51, %cst_28 {dimension_numbers = #tpu.dot_dimension_numbers<[1], [0], [0], [1], [0, 0, 1, 1], [], []>} : vector<16x16xf32>, vector<16x16xf32>, vector<16x16xf32> -> vector<16x16xf32>
    %53 = vector.extract_strided_slice %9 {offsets = [16, 0], sizes = [16, 16], strides = [1, 1]} : vector<64x16xf32> to vector<16x16xf32>
    %cst_29 = arith.constant dense<0.000000e+00> : vector<16x16xf32>
    %54 = tpu.matmul %4, %53, %cst_29 {dimension_numbers = #tpu.dot_dimension_numbers<[1], [0], [0], [1], [0, 0, 1, 1], [], []>} : vector<16x16xf32>, vector<16x16xf32>, vector<16x16xf32> -> vector<16x16xf32>
    %55 = vector.extract_strided_slice %11 {offsets = [16, 0], sizes = [16, 16], strides = [1, 1]} : vector<64x16xf32> to vector<16x16xf32>
    %cst_30 = arith.constant dense<0.000000e+00> : vector<16x16xf32>
    %56 = tpu.matmul %4, %55, %cst_30 {dimension_numbers = #tpu.dot_dimension_numbers<[1], [0], [0], [1], [0, 0, 1, 1], [], []>} : vector<16x16xf32>, vector<16x16xf32>, vector<16x16xf32> -> vector<16x16xf32>
    %57 = vector.extract_strided_slice %13 {offsets = [16, 0], sizes = [16, 16], strides = [1, 1]} : vector<64x16xf32> to vector<16x16xf32>
    %cst_31 = arith.constant dense<0.000000e+00> : vector<16x16xf32>
    %58 = tpu.matmul %4, %57, %cst_31 {dimension_numbers = #tpu.dot_dimension_numbers<[1], [0], [0], [1], [0, 0, 1, 1], [], []>} : vector<16x16xf32>, vector<16x16xf32>, vector<16x16xf32> -> vector<16x16xf32>
    %59 = arith.mulf %50, %50 : vector<16x16xf32>
    %60 = arith.mulf %52, %52 : vector<16x16xf32>
    %61 = arith.mulf %50, %52 : vector<16x16xf32>
    %62 = arith.subf %54, %59 : vector<16x16xf32>
    %63 = arith.subf %56, %60 : vector<16x16xf32>
    %64 = arith.subf %58, %61 : vector<16x16xf32>
    %cst_32 = arith.constant 2.000000e+00 : f32
    %65 = vector.broadcast %cst_32 : f32 to vector<16x16xf32>
    %66 = arith.mulf %65, %61 : vector<16x16xf32>
    %cst_33 = arith.constant 9.99999974E-5 : f32
    %67 = vector.broadcast %cst_33 : f32 to vector<16x16xf32>
    %68 = arith.addf %66, %67 : vector<16x16xf32>
    %cst_34 = arith.constant 2.000000e+00 : f32
    %69 = vector.broadcast %cst_34 : f32 to vector<16x16xf32>
    %70 = arith.mulf %69, %64 : vector<16x16xf32>
    %cst_35 = arith.constant 8.99999984E-4 : f32
    %71 = vector.broadcast %cst_35 : f32 to vector<16x16xf32>
    %72 = arith.addf %70, %71 : vector<16x16xf32>
    %73 = arith.mulf %68, %72 : vector<16x16xf32>
    %74 = arith.addf %59, %60 : vector<16x16xf32>
    %cst_36 = arith.constant 9.99999974E-5 : f32
    %75 = vector.broadcast %cst_36 : f32 to vector<16x16xf32>
    %76 = arith.addf %74, %75 : vector<16x16xf32>
    %77 = arith.addf %62, %63 : vector<16x16xf32>
    %cst_37 = arith.constant 8.99999984E-4 : f32
    %78 = vector.broadcast %cst_37 : f32 to vector<16x16xf32>
    %79 = arith.addf %77, %78 : vector<16x16xf32>
    %80 = arith.mulf %76, %79 : vector<16x16xf32>
    %81 = arith.divf %73, %80 : vector<16x16xf32>
    %82 = arith.addf %48, %81 : vector<16x16xf32>
    %83 = vector.extract_strided_slice %6 {offsets = [32, 0], sizes = [16, 16], strides = [1, 1]} : vector<64x16xf32> to vector<16x16xf32>
    %cst_38 = arith.constant dense<0.000000e+00> : vector<16x16xf32>
    %84 = tpu.matmul %4, %83, %cst_38 {dimension_numbers = #tpu.dot_dimension_numbers<[1], [0], [0], [1], [0, 0, 1, 1], [], []>} : vector<16x16xf32>, vector<16x16xf32>, vector<16x16xf32> -> vector<16x16xf32>
    %85 = vector.extract_strided_slice %7 {offsets = [32, 0], sizes = [16, 16], strides = [1, 1]} : vector<64x16xf32> to vector<16x16xf32>
    %cst_39 = arith.constant dense<0.000000e+00> : vector<16x16xf32>
    %86 = tpu.matmul %4, %85, %cst_39 {dimension_numbers = #tpu.dot_dimension_numbers<[1], [0], [0], [1], [0, 0, 1, 1], [], []>} : vector<16x16xf32>, vector<16x16xf32>, vector<16x16xf32> -> vector<16x16xf32>
    %87 = vector.extract_strided_slice %9 {offsets = [32, 0], sizes = [16, 16], strides = [1, 1]} : vector<64x16xf32> to vector<16x16xf32>
    %cst_40 = arith.constant dense<0.000000e+00> : vector<16x16xf32>
    %88 = tpu.matmul %4, %87, %cst_40 {dimension_numbers = #tpu.dot_dimension_numbers<[1], [0], [0], [1], [0, 0, 1, 1], [], []>} : vector<16x16xf32>, vector<16x16xf32>, vector<16x16xf32> -> vector<16x16xf32>
    %89 = vector.extract_strided_slice %11 {offsets = [32, 0], sizes = [16, 16], strides = [1, 1]} : vector<64x16xf32> to vector<16x16xf32>
    %cst_41 = arith.constant dense<0.000000e+00> : vector<16x16xf32>
    %90 = tpu.matmul %4, %89, %cst_41 {dimension_numbers = #tpu.dot_dimension_numbers<[1], [0], [0], [1], [0, 0, 1, 1], [], []>} : vector<16x16xf32>, vector<16x16xf32>, vector<16x16xf32> -> vector<16x16xf32>
    %91 = vector.extract_strided_slice %13 {offsets = [32, 0], sizes = [16, 16], strides = [1, 1]} : vector<64x16xf32> to vector<16x16xf32>
    %cst_42 = arith.constant dense<0.000000e+00> : vector<16x16xf32>
    %92 = tpu.matmul %4, %91, %cst_42 {dimension_numbers = #tpu.dot_dimension_numbers<[1], [0], [0], [1], [0, 0, 1, 1], [], []>} : vector<16x16xf32>, vector<16x16xf32>, vector<16x16xf32> -> vector<16x16xf32>
    %93 = arith.mulf %84, %84 : vector<16x16xf32>
    %94 = arith.mulf %86, %86 : vector<16x16xf32>
    %95 = arith.mulf %84, %86 : vector<16x16xf32>
    %96 = arith.subf %88, %93 : vector<16x16xf32>
    %97 = arith.subf %90, %94 : vector<16x16xf32>
    %98 = arith.subf %92, %95 : vector<16x16xf32>
    %cst_43 = arith.constant 2.000000e+00 : f32
    %99 = vector.broadcast %cst_43 : f32 to vector<16x16xf32>
    %100 = arith.mulf %99, %95 : vector<16x16xf32>
    %cst_44 = arith.constant 9.99999974E-5 : f32
    %101 = vector.broadcast %cst_44 : f32 to vector<16x16xf32>
    %102 = arith.addf %100, %101 : vector<16x16xf32>
    %cst_45 = arith.constant 2.000000e+00 : f32
    %103 = vector.broadcast %cst_45 : f32 to vector<16x16xf32>
    %104 = arith.mulf %103, %98 : vector<16x16xf32>
    %cst_46 = arith.constant 8.99999984E-4 : f32
    %105 = vector.broadcast %cst_46 : f32 to vector<16x16xf32>
    %106 = arith.addf %104, %105 : vector<16x16xf32>
    %107 = arith.mulf %102, %106 : vector<16x16xf32>
    %108 = arith.addf %93, %94 : vector<16x16xf32>
    %cst_47 = arith.constant 9.99999974E-5 : f32
    %109 = vector.broadcast %cst_47 : f32 to vector<16x16xf32>
    %110 = arith.addf %108, %109 : vector<16x16xf32>
    %111 = arith.addf %96, %97 : vector<16x16xf32>
    %cst_48 = arith.constant 8.99999984E-4 : f32
    %112 = vector.broadcast %cst_48 : f32 to vector<16x16xf32>
    %113 = arith.addf %111, %112 : vector<16x16xf32>
    %114 = arith.mulf %110, %113 : vector<16x16xf32>
    %115 = arith.divf %107, %114 : vector<16x16xf32>
    %116 = arith.addf %82, %115 : vector<16x16xf32>
    %117 = vector.extract_strided_slice %6 {offsets = [48, 0], sizes = [16, 16], strides = [1, 1]} : vector<64x16xf32> to vector<16x16xf32>
    %cst_49 = arith.constant dense<0.000000e+00> : vector<16x16xf32>
    %118 = tpu.matmul %4, %117, %cst_49 {dimension_numbers = #tpu.dot_dimension_numbers<[1], [0], [0], [1], [0, 0, 1, 1], [], []>} : vector<16x16xf32>, vector<16x16xf32>, vector<16x16xf32> -> vector<16x16xf32>
    %119 = vector.extract_strided_slice %7 {offsets = [48, 0], sizes = [16, 16], strides = [1, 1]} : vector<64x16xf32> to vector<16x16xf32>
    %cst_50 = arith.constant dense<0.000000e+00> : vector<16x16xf32>
    %120 = tpu.matmul %4, %119, %cst_50 {dimension_numbers = #tpu.dot_dimension_numbers<[1], [0], [0], [1], [0, 0, 1, 1], [], []>} : vector<16x16xf32>, vector<16x16xf32>, vector<16x16xf32> -> vector<16x16xf32>
    %121 = vector.extract_strided_slice %9 {offsets = [48, 0], sizes = [16, 16], strides = [1, 1]} : vector<64x16xf32> to vector<16x16xf32>
    %cst_51 = arith.constant dense<0.000000e+00> : vector<16x16xf32>
    %122 = tpu.matmul %4, %121, %cst_51 {dimension_numbers = #tpu.dot_dimension_numbers<[1], [0], [0], [1], [0, 0, 1, 1], [], []>} : vector<16x16xf32>, vector<16x16xf32>, vector<16x16xf32> -> vector<16x16xf32>
    %123 = vector.extract_strided_slice %11 {offsets = [48, 0], sizes = [16, 16], strides = [1, 1]} : vector<64x16xf32> to vector<16x16xf32>
    %cst_52 = arith.constant dense<0.000000e+00> : vector<16x16xf32>
    %124 = tpu.matmul %4, %123, %cst_52 {dimension_numbers = #tpu.dot_dimension_numbers<[1], [0], [0], [1], [0, 0, 1, 1], [], []>} : vector<16x16xf32>, vector<16x16xf32>, vector<16x16xf32> -> vector<16x16xf32>
    %125 = vector.extract_strided_slice %13 {offsets = [48, 0], sizes = [16, 16], strides = [1, 1]} : vector<64x16xf32> to vector<16x16xf32>
    %cst_53 = arith.constant dense<0.000000e+00> : vector<16x16xf32>
    %126 = tpu.matmul %4, %125, %cst_53 {dimension_numbers = #tpu.dot_dimension_numbers<[1], [0], [0], [1], [0, 0, 1, 1], [], []>} : vector<16x16xf32>, vector<16x16xf32>, vector<16x16xf32> -> vector<16x16xf32>
    %127 = arith.mulf %118, %118 : vector<16x16xf32>
    %128 = arith.mulf %120, %120 : vector<16x16xf32>
    %129 = arith.mulf %118, %120 : vector<16x16xf32>
    %130 = arith.subf %122, %127 : vector<16x16xf32>
    %131 = arith.subf %124, %128 : vector<16x16xf32>
    %132 = arith.subf %126, %129 : vector<16x16xf32>
    %cst_54 = arith.constant 2.000000e+00 : f32
    %133 = vector.broadcast %cst_54 : f32 to vector<16x16xf32>
    %134 = arith.mulf %133, %129 : vector<16x16xf32>
    %cst_55 = arith.constant 9.99999974E-5 : f32
    %135 = vector.broadcast %cst_55 : f32 to vector<16x16xf32>
    %136 = arith.addf %134, %135 : vector<16x16xf32>
    %cst_56 = arith.constant 2.000000e+00 : f32
    %137 = vector.broadcast %cst_56 : f32 to vector<16x16xf32>
    %138 = arith.mulf %137, %132 : vector<16x16xf32>
    %cst_57 = arith.constant 8.99999984E-4 : f32
    %139 = vector.broadcast %cst_57 : f32 to vector<16x16xf32>
    %140 = arith.addf %138, %139 : vector<16x16xf32>
    %141 = arith.mulf %136, %140 : vector<16x16xf32>
    %142 = arith.addf %127, %128 : vector<16x16xf32>
    %cst_58 = arith.constant 9.99999974E-5 : f32
    %143 = vector.broadcast %cst_58 : f32 to vector<16x16xf32>
    %144 = arith.addf %142, %143 : vector<16x16xf32>
    %145 = arith.addf %130, %131 : vector<16x16xf32>
    %cst_59 = arith.constant 8.99999984E-4 : f32
    %146 = vector.broadcast %cst_59 : f32 to vector<16x16xf32>
    %147 = arith.addf %145, %146 : vector<16x16xf32>
    %148 = arith.mulf %144, %147 : vector<16x16xf32>
    %149 = arith.divf %141, %148 : vector<16x16xf32>
    %150 = arith.addf %116, %149 : vector<16x16xf32>
    %151 = vector.shape_cast %150 : vector<16x16xf32> to vector<1x16x16xf32>
    %cst_60 = arith.constant dense<0.000000e+00> : vector<1xf32>
    %152 = vector.multi_reduction <add>, %151, %cst_60 [1, 2] : vector<1x16x16xf32> to vector<1xf32>
    %153 = vector.shape_cast %152 : vector<1xf32> to vector<1x1x1xf32>
    %154 = vector.extract %153[0, 0, 0] : f32 from vector<1x1x1xf32>
    %155 = vector.broadcast %154 : f32 to vector<1x8x128xf32>
    %c0_61 = arith.constant 0 : index
    %c0_62 = arith.constant 0 : index
    %c0_63 = arith.constant 0 : index
    %156 = vector.load %arg5[%c0_61, %c0_62, %c0_63] : memref<1x8x128xf32, #tpu.memory_space<vmem>>, vector<1x8x128xf32>
    tpu.vector_store %arg5[%c0_61, %c0_62, %c0_63], %155 {strides = array<i32>} : memref<1x8x128xf32, #tpu.memory_space<vmem>>, vector<1x8x128xf32>,
    return
  }
  func.func @transform_0(%arg0: i32) -> (i32, i32) {
    %c0_i32 = arith.constant 0 : i32
    %c0_i32_0 = arith.constant 0 : i32
    %c0_i32_1 = arith.constant 0 : i32
    return %c0_i32, %c0_i32_0 : i32, i32
  }
  func.func @transform_1(%arg0: i32) -> (i32, i32) {
    %c0_i32 = arith.constant 0 : i32
    %c0_i32_0 = arith.constant 0 : i32
    %c0_i32_1 = arith.constant 0 : i32
    return %c0_i32, %c0_i32_0 : i32, i32
  }
  func.func @transform_2(%arg0: i32) -> (i32, i32, i32, i32) {
    %c0_i32 = arith.constant 0 : i32
    %c0_i32_0 = arith.constant 0 : i32
    %c0_i32_1 = arith.constant 0 : i32
    %c0_i32_2 = arith.constant 0 : i32
    return %arg0, %c0_i32, %c0_i32_0, %c0_i32_1 : i32, i32, i32, i32
  }
  func.func @transform_3(%arg0: i32) -> (i32, i32, i32, i32) {
    %c0_i32 = arith.constant 0 : i32
    %c0_i32_0 = arith.constant 0 : i32
    %c0_i32_1 = arith.constant 0 : i32
    %c0_i32_2 = arith.constant 0 : i32
    return %arg0, %c0_i32, %c0_i32_0, %c0_i32_1 : i32, i32, i32, i32
  }
  func.func @transform_4(%arg0: i32) -> (i32, i32, i32) {
    %c0_i32 = arith.constant 0 : i32
    %c0_i32_0 = arith.constant 0 : i32
    %c0_i32_1 = arith.constant 0 : i32
    return %arg0, %c0_i32, %c0_i32_0 : i32, i32, i32
  }
}

</mosaic_0001>

<llo_original>
// kernel: tpu_custom_call.1
$region0: #{tpu_custom_call.1}
  #allocation0 [shape = 'u32[]', space=smem, size = 0x4, offset = 0x4, fixed_abs, tag = 'smem constant byte address 0x4 - core index']
  #allocation1 [shape = 'u32[72,128]{1,0:T(1,128)}', space=vmem, size = 0x9000, scoped, tag = 'internal scratch']
  %s0 = inlined_call_operand.hbm [shape: f32[16,16], index: 0, kind: input, shape index: {}]
  %s1 = inlined_call_operand.hbm [shape: f32[16,16], index: 1, kind: input, shape index: {}]
  %s2 = inlined_call_operand.hbm [shape: f32[2,4,16,16], index: 2, kind: input, shape index: {}]
  %s3 = inlined_call_operand.hbm [shape: f32[2,4,16,16], index: 3, kind: input, shape index: {}]
  %s4 = inlined_call_operand.hbm [shape: f32[2,8,128], index: 4, kind: output, shape index: {}]
  %s5 = sld [smem:[#allocation0]]
  $region65: #{tpu_custom_call.1} parent=0
    _
  %s7 = ssub.s32 1, %s5
  %s8 = scalar_select 0, %s7, %s5
  $region1: #{tpu_custom_call.1} parent=0
    #allocation2 [shape = 'u8[8192]{0}', space=vmem, size = 0x2000, scoped, tag = 'input window, operand 0, single buffered']
    #allocation3 [shape = 's32[2]{0}', space=sflag, size = 0x8, scoped, tag = 'scoped memory for tpu_custom_call.1']
    #allocation4 [shape = 's32[2]{0}', space=sflag, size = 0x8, scoped, tag = 'scoped memory for tpu_custom_call.1']
    #allocation5 [shape = 'u8[8192]{0}', space=vmem, size = 0x2000, scoped, tag = 'input window, operand 1, single buffered']
    #allocation6 [shape = 's32[1]{0}', space=sflag, size = 0x4, scoped, tag = 'scoped memory for tpu_custom_call.1']
    #allocation7 [shape = 'u8[65536]{0}', space=vmem, size = 0x10000, scoped, tag = 'input window, operand 2']
    #allocation8 [shape = 'u8[65536]{0}', space=vmem, size = 0x10000, scoped, tag = 'input window, operand 3']
    #allocation9 [shape = 'u8[8192]{0}', space=vmem, size = 0x2000, scoped, tag = 'output window, operand 0']
    %9 = vsyncpa [#allocation3], 0
    %10 = vsyncpa [#allocation6], 0
    %11 = vsyncpa [#allocation4], 0
    %s12 = scalar_lea.sflag [#allocation4], 1
    %13 = vsyncpa %s12, 0
    loop: start=0, step=1, limit=4
    $region2: #{tpu_custom_call.1} parent=1 // loop_pre_header
      _
    $region3: #{tpu_custom_call.1} parent=1 // loop_header
      %s15 = sphi 0, %s19
      %p16 = scmp.ge.s32.totalorder %s15, 4
      %s23 = sphi 0, %s23
      %s25 = sphi 0, %s23
      %s26 = sphi 0, %s25
      %s40 = sphi 0, %s26
      %s44 = sphi 0, %s44
      %s46 = sphi 0, %s44
      %s47 = sphi 0, %s46
      %s61 = sphi 0, %s47
      %s67 = sphi 0, %s69
      %s70 = sphi 0, %s67
      %s71 = sphi 0, %s70
      %s87 = sphi 0, %s71
      %s93 = sphi 0, %s95
      %s96 = sphi 0, %s93
      %s97 = sphi 0, %s96
      %s113 = sphi 0, %s97
      %s119 = sphi 0, %s121
      %s122 = sphi 0, %s119
      %s123 = sphi 0, %s122
      %s139 = sphi 0, %s123
    $region4: #{tpu_custom_call.1} parent=1 // loop_header_branch
      %18 = sbr.rel (%p16) target = $region8
    $region5: #{tpu_custom_call.1} parent=1 // loop_body
      %s20 = ssub.s32 %s15, 1
      %s21 = ssub.s32 %s15, 2
      %s22 = sadd.s32 %s15, 1
      %s24 = sadd.s32 %s23, 1
      %p27 = scmp.eq.s32.totalorder %s15, 1
      %p28 = scmp.ne.s32.totalorder %s23, %s25
      %p29 = scmp.eq.s32.totalorder %s15, 0
      %p30 = por %p28, %p29
      %p31 = scmp.ne.s32.totalorder %s23, %s25
      %p32 = scmp.eq.s32.totalorder %s20, 1
      %p33 = por %p31, %p32
      %p34 = scmp.ne.s32.totalorder %s25, %s26
      %p35 = scmp.eq.s32.totalorder %s20, 0
      %p36 = por %p34, %p35
      %p37 = scmp.ne.s32.totalorder %s25, %s26
      %p38 = scmp.eq.s32.totalorder %s21, 1
      %p39 = por %p37, %p38
      %p41 = scmp.ne.s32.totalorder %s26, %s40
      %p42 = scmp.eq.s32.totalorder %s21, 0
      %p43 = por %p41, %p42
      %s45 = sadd.s32 %s44, 1
      %p48 = scmp.eq.s32.totalorder %s15, 1
      %p49 = scmp.ne.s32.totalorder %s44, %s46
      %p50 = scmp.eq.s32.totalorder %s15, 0
      %p51 = por %p49, %p50
      %p52 = scmp.ne.s32.totalorder %s44, %s46
      %p53 = scmp.eq.s32.totalorder %s20, 1
      %p54 = por %p52, %p53
      %p55 = scmp.ne.s32.totalorder %s46, %s47
      %p56 = scmp.eq.s32.totalorder %s20, 0
      %p57 = por %p55, %p56
      %p58 = scmp.ne.s32.totalorder %s46, %s47
      %p59 = scmp.eq.s32.totalorder %s21, 1
      %p60 = por %p58, %p59
      %p62 = scmp.ne.s32.totalorder %s47, %s61
      %p63 = scmp.eq.s32.totalorder %s21, 0
      %p64 = por %p62, %p63
      %s65 = ssub.s32 %s15, %s22
      %p66 = scmp.eq.s32.totalorder %s65, 0
      %s68 = sadd.s32 %s67, 1
      %s69 = scalar_select %p66, %s67, %s68
      %p72 = pneg %p66
      %p73 = scmp.eq.s32.totalorder %s15, 1
      %p74 = por %p72, %p73
      %p75 = scmp.ne.s32.totalorder %s67, %s70
      %p76 = scmp.eq.s32.totalorder %s15, 0
      %p77 = por %p75, %p76
      %p78 = scmp.ne.s32.totalorder %s67, %s70
      %p79 = scmp.eq.s32.totalorder %s20, 1
      %p80 = por %p78, %p79
      %p81 = scmp.ne.s32.totalorder %s70, %s71
      %p82 = scmp.eq.s32.totalorder %s20, 0
      %p83 = por %p81, %p82
      %p84 = scmp.ne.s32.totalorder %s70, %s71
      %p85 = scmp.eq.s32.totalorder %s21, 1
      %p86 = por %p84, %p85
      %p88 = scmp.ne.s32.totalorder %s71, %s87
      %p89 = scmp.eq.s32.totalorder %s21, 0
      %p90 = por %p88, %p89
      %s91 = ssub.s32 %s15, %s22
      %p92 = scmp.eq.s32.totalorder %s91, 0
      %s94 = sadd.s32 %s93, 1
      %s95 = scalar_select %p92, %s93, %s94
      %p98 = pneg %p92
      %p99 = scmp.eq.s32.totalorder %s15, 1
      %p100 = por %p98, %p99
      %p101 = scmp.ne.s32.totalorder %s93, %s96
      %p102 = scmp.eq.s32.totalorder %s15, 0
      %p103 = por %p101, %p102
      %p104 = scmp.ne.s32.totalorder %s93, %s96
      %p105 = scmp.eq.s32.totalorder %s20, 1
      %p106 = por %p104, %p105
      %p107 = scmp.ne.s32.totalorder %s96, %s97
      %p108 = scmp.eq.s32.totalorder %s20, 0
      %p109 = por %p107, %p108
      %p110 = scmp.ne.s32.totalorder %s96, %s97
      %p111 = scmp.eq.s32.totalorder %s21, 1
      %p112 = por %p110, %p111
      %p114 = scmp.ne.s32.totalorder %s97, %s113
      %p115 = scmp.eq.s32.totalorder %s21, 0
      %p116 = por %p114, %p115
      %s117 = ssub.s32 %s15, %s22
      %p118 = scmp.eq.s32.totalorder %s117, 0
      %s120 = sadd.s32 %s119, 1
      %s121 = scalar_select %p118, %s119, %s120
      %p124 = pneg %p118
      %p125 = scmp.eq.s32.totalorder %s15, 1
      %p126 = por %p124, %p125
      %p127 = scmp.ne.s32.totalorder %s119, %s122
      %p128 = scmp.eq.s32.totalorder %s15, 0
      %p129 = por %p127, %p128
      %p130 = scmp.ne.s32.totalorder %s119, %s122
      %p131 = scmp.eq.s32.totalorder %s20, 1
      %p132 = por %p130, %p131
      %p133 = scmp.ne.s32.totalorder %s122, %s123
      %p134 = scmp.eq.s32.totalorder %s20, 0
      %p135 = por %p133, %p134
      %p136 = scmp.ne.s32.totalorder %s122, %s123
      %p137 = scmp.eq.s32.totalorder %s21, 1
      %p138 = por %p136, %p137
      %p140 = scmp.ne.s32.totalorder %s123, %s139
      %p141 = scmp.eq.s32.totalorder %s21, 0
      %p142 = por %p140, %p141
      %p143 = scmp.le.s32.totalorder 1, %s15
      %p144 = scmp.lt.s32.totalorder %s15, 3
      %p145 = pnand %p143, %p144
      %p146 = pneg %p145
      // Predicated region
      $region9: #{tpu_custom_call.1} parent=5 // pred_check
        _
      $region10: #{tpu_custom_call.1} parent=5 // pred_check_branch
        %148 = sbr.rel (%p145) target = $region12
      $region11: #{tpu_custom_call.1} parent=5 // pred_region
        %s149 = ssub.s32 %s15, 1
        // Predicated region
        $region13: #{tpu_custom_call.1} parent=11 // pred_check
          %p150 = pneg %p36
        $region14: #{tpu_custom_call.1} parent=11 // pred_check_branch
          %152 = sbr.rel (%p150) target = $region16
        $region15: #{tpu_custom_call.1} parent=11 // pred_region
          %154 = vsyncadd [#allocation3], 0
          %s155 = sshll.u32 %s0, 4
          %s156 = int_to_ptr.hbm [resolvable:$true] %s155
          %s157 = sshll.u32 [#allocation2], 4
          %s158 = int_to_ptr.vmem [resolvable:$true] %s157
          %163 = dma.hbm_to_vmem [thread:$0]  %s156, 256, %s158, [#allocation3], 128, 128, 8
        $region16: #{tpu_custom_call.1} parent=11 // pred_fallthru
          _
        // Predicated region
        $region17: #{tpu_custom_call.1} parent=11 // pred_check
          %p164 = pneg %p57
        $region18: #{tpu_custom_call.1} parent=11 // pred_check_branch
          %166 = sbr.rel (%p164) target = $region20
        $region19: #{tpu_custom_call.1} parent=11 // pred_region
          %168 = vsyncadd [#allocation6], 0
          %s169 = sshll.u32 %s1, 4
          %s170 = int_to_ptr.hbm [resolvable:$true] %s169
          %s171 = sshll.u32 [#allocation5], 4
          %s172 = int_to_ptr.vmem [resolvable:$true] %s171
          %177 = dma.hbm_to_vmem [thread:$0]  %s170, 256, %s172, [#allocation6], 128, 128, 8
        $region20: #{tpu_custom_call.1} parent=11 // pred_fallthru
          _
      $region12: #{tpu_custom_call.1} parent=5 // pred_fallthru
        _
      %p178 = scmp.lt.s32.totalorder %s15, 2
      // Predicated region
      $region21: #{tpu_custom_call.1} parent=5 // pred_check
        %p179 = pneg %p178
      $region22: #{tpu_custom_call.1} parent=5 // pred_check_branch
        %181 = sbr.rel (%p179) target = $region24
      $region23: #{tpu_custom_call.1} parent=5 // pred_region
        // Predicated region
        $region25: #{tpu_custom_call.1} parent=23 // pred_check
          %p182 = pneg %p77
        $region26: #{tpu_custom_call.1} parent=23 // pred_check_branch
          %184 = sbr.rel (%p182) target = $region28
        $region27: #{tpu_custom_call.1} parent=23 // pred_region
          %s185 = sand.u32 %s15, 1
          %s186 = scalar_lea.sflag [#allocation3], %s185
          %s187 = sand.u32 %s67, 1
          %s188 = smul.addr %s187, 64
          %s189 = scalar_lea.vmem [#allocation7], %s188
          %191 = vsyncadd %s186, 0
          %s192 = smul.addr %s15, 8
          %s193 = smul.addr %s192, 8
          %s194 = scalar_lea.hbm %s2, %s193
          %s195 = sshll.u32 %s194, 4
          %s196 = int_to_ptr.hbm [resolvable:$true] %s195
          %s197 = sshll.u32 %s189, 4
          %s198 = int_to_ptr.vmem [resolvable:$true] %s197
          %203 = dma.hbm_to_vmem [thread:$0]  %s196, 1024, %s198, %s186, 128, 128, 8
        $region28: #{tpu_custom_call.1} parent=23 // pred_fallthru
          _
        // Predicated region
        $region29: #{tpu_custom_call.1} parent=23 // pred_check
          %p204 = pneg %p103
        $region30: #{tpu_custom_call.1} parent=23 // pred_check_branch
          %206 = sbr.rel (%p204) target = $region32
        $region31: #{tpu_custom_call.1} parent=23 // pred_region
          %s207 = sand.u32 %s15, 1
          %s208 = scalar_lea.sflag [#allocation3], %s207
          %s209 = sand.u32 %s93, 1
          %s210 = smul.addr %s209, 64
          %s211 = scalar_lea.vmem [#allocation8], %s210
          %213 = vsyncadd %s208, 0
          %s214 = smul.addr %s15, 8
          %s215 = smul.addr %s214, 8
          %s216 = scalar_lea.hbm %s3, %s215
          %s217 = sshll.u32 %s216, 4
          %s218 = int_to_ptr.hbm [resolvable:$true] %s217
          %s219 = sshll.u32 %s211, 4
          %s220 = int_to_ptr.vmem [resolvable:$true] %s219
          %225 = dma.hbm_to_vmem [thread:$0]  %s218, 1024, %s220, %s208, 128, 128, 8
        $region32: #{tpu_custom_call.1} parent=23 // pred_fallthru
          _
      $region24: #{tpu_custom_call.1} parent=5 // pred_fallthru
        _
      %p226 = scmp.le.s32.totalorder 1, %s15
      %p227 = scmp.lt.s32.totalorder %s15, 3
      %p228 = pnand %p226, %p227
      %p229 = pneg %p228
      // Predicated region
      $region33: #{tpu_custom_call.1} parent=5 // pred_check
        _
      $region34: #{tpu_custom_call.1} parent=5 // pred_check_branch
        %231 = sbr.rel (%p228) target = $region36
      $region35: #{tpu_custom_call.1} parent=5 // pred_region
        %s232 = ssub.s32 %s15, 1
        // Predicated region
        $region37: #{tpu_custom_call.1} parent=35 // pred_check
          %p233 = pneg %p36
        $region38: #{tpu_custom_call.1} parent=35 // pred_check_branch
          %235 = sbr.rel (%p233) target = $region40
        $region39: #{tpu_custom_call.1} parent=35 // pred_region
          %237 = dma.done [#allocation3], 256
        $region40: #{tpu_custom_call.1} parent=35 // pred_fallthru
          _
        // Predicated region
        $region41: #{tpu_custom_call.1} parent=35 // pred_check
          %p238 = pneg %p57
        $region42: #{tpu_custom_call.1} parent=35 // pred_check_branch
          %240 = sbr.rel (%p238) target = $region44
        $region43: #{tpu_custom_call.1} parent=35 // pred_region
          %242 = dma.done [#allocation6], 256
        $region44: #{tpu_custom_call.1} parent=35 // pred_fallthru
          _
        %s243 = sand.u32 %s20, 1
        %s244 = scalar_lea.sflag [#allocation3], %s243
        %s245 = sand.u32 %s70, 1
        %s246 = smul.addr %s245, 64
        %s247 = scalar_lea.vmem [#allocation7], %s246
        // Predicated region
        $region45: #{tpu_custom_call.1} parent=35 // pred_check
          %p248 = pneg %p83
        $region46: #{tpu_custom_call.1} parent=35 // pred_check_branch
          %250 = sbr.rel (%p248) target = $region48
        $region47: #{tpu_custom_call.1} parent=35 // pred_region
          %252 = dma.done %s244, 1024
        $region48: #{tpu_custom_call.1} parent=35 // pred_fallthru
          _
        %s253 = sand.u32 %s20, 1
        %s254 = scalar_lea.sflag [#allocation3], %s253
        %s255 = sand.u32 %s96, 1
        %s256 = smul.addr %s255, 64
        %s257 = scalar_lea.vmem [#allocation8], %s256
        // Predicated region
        $region49: #{tpu_custom_call.1} parent=35 // pred_check
          %p258 = pneg %p109
        $region50: #{tpu_custom_call.1} parent=35 // pred_check_branch
          %260 = sbr.rel (%p258) target = $region52
        $region51: #{tpu_custom_call.1} parent=35 // pred_region
          %262 = dma.done %s254, 1024
        $region52: #{tpu_custom_call.1} parent=35 // pred_fallthru
          _
        %p263 = pneg %p36
        %p264 = pneg %p33
        %p265 = pneg %p57
        %p266 = pneg %p54
        %s267 = sand.u32 %s20, 1
        %s268 = scalar_lea.sflag [#allocation3], %s267
        %s269 = sand.u32 %s70, 1
        %s270 = smul.addr %s269, 64
        %s271 = scalar_lea.vmem [#allocation7], %s270
        %p272 = pneg %p83
        %p273 = pneg %p80
        %s274 = sand.u32 %s20, 1
        %s275 = scalar_lea.sflag [#allocation3], %s274
        %s276 = sand.u32 %s96, 1
        %s277 = smul.addr %s276, 64
        %s278 = scalar_lea.vmem [#allocation8], %s277
        %p279 = pneg %p109
        %p280 = pneg %p106
        %p281 = pneg %p135
        %p282 = pneg %p132
        %s283 = sand.u32 %s122, 1
        %s284 = scalar_lea.sflag [#allocation4], %s283
        %s285 = sand.u32 %s122, 1
        %s286 = smul.addr %s285, 8
        %s287 = scalar_lea.vmem [#allocation9], %s286
        %v288 = vld [vmem:[%s247] sm:$0xff]
        %v289 = vld [vmem:[%s247 + $0x8] sm:$0xff]
        %v290 = vld [vmem:[%s247 + $0x10] sm:$0xff]
        %v291 = vld [vmem:[%s247 + $0x18] sm:$0xff]
        %v292 = vld [vmem:[%s247 + $0x20] sm:$0xff]
        %v293 = vld [vmem:[%s247 + $0x28] sm:$0xff]
        %v294 = vld [vmem:[%s247 + $0x30] sm:$0xff]
        %v295 = vld [vmem:[%s247 + $0x38] sm:$0xff]
        %v296 = vld [vmem:[%s257] sm:$0xff]
        %v297 = vld [vmem:[%s257 + $0x8] sm:$0xff]
        %v298 = vld [vmem:[%s257 + $0x10] sm:$0xff]
        %v299 = vld [vmem:[%s257 + $0x18] sm:$0xff]
        %v300 = vld [vmem:[%s257 + $0x20] sm:$0xff]
        %v301 = vld [vmem:[%s257 + $0x28] sm:$0xff]
        %v302 = vld [vmem:[%s257 + $0x30] sm:$0xff]
        %v303 = vld [vmem:[%s257 + $0x38] sm:$0xff]
        %v304 = vld [vmem:[#allocation2] sm:$0xff]
        %v305 = vld [vmem:[#allocation2 + $0x8] sm:$0xff]
        %v306 = vld [vmem:[#allocation5] sm:$0xff]
        %v307 = vld [vmem:[#allocation5 + $0x8] sm:$0xff]
        %vm308 = vcmask 130048
        %v310 = vsel %vm308, %v288, 0
        %v313 = vsel %vm308, %v289, 0
        %v316 = vsel %vm308, %v290, 0
        %v319 = vsel %vm308, %v291, 0
        %v322 = vsel %vm308, %v292, 0
        %v325 = vsel %vm308, %v293, 0
        %v328 = vsel %vm308, %v294, 0
        %v331 = vsel %vm308, %v295, 0
        %333 = vmatpush.msra.mxu0 0.0
        %334 = vmatpush.msra.mxu0 0.0
        %335 = vmatpush.msra.mxu0 0.0
        %336 = vmatpush.msra.mxu0 0.0
        %337 = vmatpush.msra.mxu0 0.0
        %338 = vmatpush.msra.mxu0 0.0
        %339 = vmatpush.msra.mxu0 0.0
        %340 = vmatpush.msra.mxu0 0.0
        %341 = vmatpush.msra.mxu0 0.0
        %342 = vmatpush.msra.mxu0 0.0
        %343 = vmatpush.msra.mxu0 0.0
        %344 = vmatpush.msra.mxu0 0.0
        %345 = vmatpush.msra.mxu0 0.0
        %346 = vmatpush.msra.mxu0 0.0
        %347 = vmatpush.msra.mxu0 %v307
        %348 = vmatpush.msra.mxu0 %v306
        %349 = vmatmul.f32.gmra.mxu0 %v310
        %v350 = vpop.f32.mrf.mxu0
        %v351 = vadd.f32 0.0, %v350
        %352 = vmatmul.f32.gmra.mxu0 %v313
        %v353 = vpop.f32.mrf.mxu0
        %v354 = vadd.f32 0.0, %v353
        %355 = vmatmul.f32.gmra.mxu0 %v316
        %v356 = vpop.f32.mrf.mxu0
        %v357 = vadd.f32 0.0, %v356
        %358 = vmatmul.f32.gmra.mxu0 %v319
        %v359 = vpop.f32.mrf.mxu0
        %v360 = vadd.f32 0.0, %v359
        %361 = vmatmul.f32.gmra.mxu0 %v322
        %v362 = vpop.f32.mrf.mxu0
        %v363 = vadd.f32 0.0, %v362
        %364 = vmatmul.f32.gmra.mxu0 %v325
        %v365 = vpop.f32.mrf.mxu0
        %v366 = vadd.f32 0.0, %v365
        %367 = vmatmul.f32.gmra.mxu0 %v328
        %v368 = vpop.f32.mrf.mxu0
        %v369 = vadd.f32 0.0, %v368
        %370 = vmatmul.f32.gmra.mxu0 %v331
        %v371 = vpop.f32.mrf.mxu0
        %v372 = vadd.f32 0.0, %v371
        %373 = vdwg.mxu0
        %v375 = vsel %vm308, %v296, 0
        %v378 = vsel %vm308, %v297, 0
        %v381 = vsel %vm308, %v298, 0
        %v384 = vsel %vm308, %v299, 0
        %v387 = vsel %vm308, %v300, 0
        %v390 = vsel %vm308, %v301, 0
        %v393 = vsel %vm308, %v302, 0
        %v396 = vsel %vm308, %v303, 0
        %398 = vmatpush.msra.mxu0 0.0
        %399 = vmatpush.msra.mxu0 0.0
        %400 = vmatpush.msra.mxu0 0.0
        %401 = vmatpush.msra.mxu0 0.0
        %402 = vmatpush.msra.mxu0 0.0
        %403 = vmatpush.msra.mxu0 0.0
        %404 = vmatpush.msra.mxu0 0.0
        %405 = vmatpush.msra.mxu0 0.0
        %406 = vmatpush.msra.mxu0 0.0
        %407 = vmatpush.msra.mxu0 0.0
        %408 = vmatpush.msra.mxu0 0.0
        %409 = vmatpush.msra.mxu0 0.0
        %410 = vmatpush.msra.mxu0 0.0
        %411 = vmatpush.msra.mxu0 0.0
        %412 = vmatpush.msra.mxu0 %v307
        %413 = vmatpush.msra.mxu0 %v306
        %414 = vmatmul.f32.gmra.mxu0 %v375
        %v415 = vpop.f32.mrf.mxu0
        %v416 = vadd.f32 0.0, %v415
        %417 = vmatmul.f32.gmra.mxu0 %v378
        %v418 = vpop.f32.mrf.mxu0
        %v419 = vadd.f32 0.0, %v418
        %420 = vmatmul.f32.gmra.mxu0 %v381
        %v421 = vpop.f32.mrf.mxu0
        %v422 = vadd.f32 0.0, %v421
        %423 = vmatmul.f32.gmra.mxu0 %v384
        %v424 = vpop.f32.mrf.mxu0
        %v425 = vadd.f32 0.0, %v424
        %426 = vmatmul.f32.gmra.mxu0 %v387
        %v427 = vpop.f32.mrf.mxu0
        %v428 = vadd.f32 0.0, %v427
        %429 = vmatmul.f32.gmra.mxu0 %v390
        %v430 = vpop.f32.mrf.mxu0
        %v431 = vadd.f32 0.0, %v430
        %432 = vmatmul.f32.gmra.mxu0 %v393
        %v433 = vpop.f32.mrf.mxu0
        %v434 = vadd.f32 0.0, %v433
        %435 = vmatmul.f32.gmra.mxu0 %v396
        %v436 = vpop.f32.mrf.mxu0
        %v437 = vadd.f32 0.0, %v436
        %438 = vdwg.mxu0
        %v439 = vmul.f32 %v288, %v288
        %v440 = vmul.f32 %v289, %v289
        %v441 = vmul.f32 %v290, %v290
        %v442 = vmul.f32 %v291, %v291
        %v443 = vmul.f32 %v292, %v292
        %v444 = vmul.f32 %v293, %v293
        %v445 = vmul.f32 %v294, %v294
        %v446 = vmul.f32 %v295, %v295
        %v448 = vsel %vm308, %v439, 0
        %v451 = vsel %vm308, %v440, 0
        %v454 = vsel %vm308, %v441, 0
        %v457 = vsel %vm308, %v442, 0
        %v460 = vsel %vm308, %v443, 0
        %v463 = vsel %vm308, %v444, 0
        %v466 = vsel %vm308, %v445, 0
        %v469 = vsel %vm308, %v446, 0
        %471 = vmatpush.msra.mxu0 0.0
        %472 = vmatpush.msra.mxu0 0.0
        %473 = vmatpush.msra.mxu0 0.0
        %474 = vmatpush.msra.mxu0 0.0
        %475 = vmatpush.msra.mxu0 0.0
        %476 = vmatpush.msra.mxu0 0.0
        %477 = vmatpush.msra.mxu0 0.0
        %478 = vmatpush.msra.mxu0 0.0
        %479 = vmatpush.msra.mxu0 0.0
        %480 = vmatpush.msra.mxu0 0.0
        %481 = vmatpush.msra.mxu0 0.0
        %482 = vmatpush.msra.mxu0 0.0
        %483 = vmatpush.msra.mxu0 0.0
        %484 = vmatpush.msra.mxu0 0.0
        %485 = vmatpush.msra.mxu0 %v307
        %486 = vmatpush.msra.mxu0 %v306
        %487 = vmatmul.f32.gmra.mxu0 %v448
        %v488 = vpop.f32.mrf.mxu0
        %v489 = vadd.f32 0.0, %v488
        %490 = vmatmul.f32.gmra.mxu0 %v451
        %v491 = vpop.f32.mrf.mxu0
        %v492 = vadd.f32 0.0, %v491
        %493 = vmatmul.f32.gmra.mxu0 %v454
        %v494 = vpop.f32.mrf.mxu0
        %v495 = vadd.f32 0.0, %v494
        %496 = vmatmul.f32.gmra.mxu0 %v457
        %v497 = vpop.f32.mrf.mxu0
        %v498 = vadd.f32 0.0, %v497
        %499 = vmatmul.f32.gmra.mxu0 %v460
        %v500 = vpop.f32.mrf.mxu0
        %v501 = vadd.f32 0.0, %v500
        %502 = vmatmul.f32.gmra.mxu0 %v463
        %v503 = vpop.f32.mrf.mxu0
        %v504 = vadd.f32 0.0, %v503
        %505 = vmatmul.f32.gmra.mxu0 %v466
        %v506 = vpop.f32.mrf.mxu0
        %v507 = vadd.f32 0.0, %v506
        %508 = vmatmul.f32.gmra.mxu0 %v469
        %v509 = vpop.f32.mrf.mxu0
        %v510 = vadd.f32 0.0, %v509
        %511 = vdwg.mxu0
        %v512 = vmul.f32 %v296, %v296
        %v513 = vmul.f32 %v297, %v297
        %v514 = vmul.f32 %v298, %v298
        %v515 = vmul.f32 %v299, %v299
        %v516 = vmul.f32 %v300, %v300
        %v517 = vmul.f32 %v301, %v301
        %v518 = vmul.f32 %v302, %v302
        %v519 = vmul.f32 %v303, %v303
        %v521 = vsel %vm308, %v512, 0
        %v524 = vsel %vm308, %v513, 0
        %v527 = vsel %vm308, %v514, 0
        %v530 = vsel %vm308, %v515, 0
        %v533 = vsel %vm308, %v516, 0
        %v536 = vsel %vm308, %v517, 0
        %v539 = vsel %vm308, %v518, 0
        %v542 = vsel %vm308, %v519, 0
        %544 = vmatpush.msra.mxu0 0.0
        %545 = vmatpush.msra.mxu0 0.0
        %546 = vmatpush.msra.mxu0 0.0
        %547 = vmatpush.msra.mxu0 0.0
        %548 = vmatpush.msra.mxu0 0.0
        %549 = vmatpush.msra.mxu0 0.0
        %550 = vmatpush.msra.mxu0 0.0
        %551 = vmatpush.msra.mxu0 0.0
        %552 = vmatpush.msra.mxu0 0.0
        %553 = vmatpush.msra.mxu0 0.0
        %554 = vmatpush.msra.mxu0 0.0
        %555 = vmatpush.msra.mxu0 0.0
        %556 = vmatpush.msra.mxu0 0.0
        %557 = vmatpush.msra.mxu0 0.0
        %558 = vmatpush.msra.mxu0 %v307
        %559 = vmatpush.msra.mxu0 %v306
        %560 = vmatmul.f32.gmra.mxu0 %v521
        %v561 = vpop.f32.mrf.mxu0
        %v562 = vadd.f32 0.0, %v561
        %563 = vmatmul.f32.gmra.mxu0 %v524
        %v564 = vpop.f32.mrf.mxu0
        %v565 = vadd.f32 0.0, %v564
        %566 = vmatmul.f32.gmra.mxu0 %v527
        %v567 = vpop.f32.mrf.mxu0
        %v568 = vadd.f32 0.0, %v567
        %569 = vmatmul.f32.gmra.mxu0 %v530
        %v570 = vpop.f32.mrf.mxu0
        %v571 = vadd.f32 0.0, %v570
        %572 = vmatmul.f32.gmra.mxu0 %v533
        %v573 = vpop.f32.mrf.mxu0
        %v574 = vadd.f32 0.0, %v573
        %575 = vmatmul.f32.gmra.mxu0 %v536
        %v576 = vpop.f32.mrf.mxu0
        %v577 = vadd.f32 0.0, %v576
        %578 = vmatmul.f32.gmra.mxu0 %v539
        %v579 = vpop.f32.mrf.mxu0
        %v580 = vadd.f32 0.0, %v579
        %581 = vmatmul.f32.gmra.mxu0 %v542
        %v582 = vpop.f32.mrf.mxu0
        %v583 = vadd.f32 0.0, %v582
        %584 = vdwg.mxu0
        %v585 = vmul.f32 %v288, %v296
        %v586 = vmul.f32 %v289, %v297
        %v587 = vmul.f32 %v290, %v298
        %v588 = vmul.f32 %v291, %v299
        %v589 = vmul.f32 %v292, %v300
        %v590 = vmul.f32 %v293, %v301
        %v591 = vmul.f32 %v294, %v302
        %v592 = vmul.f32 %v295, %v303
        %v594 = vsel %vm308, %v585, 0
        %v597 = vsel %vm308, %v586, 0
        %v600 = vsel %vm308, %v587, 0
        %v603 = vsel %vm308, %v588, 0
        %v606 = vsel %vm308, %v589, 0
        %v609 = vsel %vm308, %v590, 0
        %v612 = vsel %vm308, %v591, 0
        %v615 = vsel %vm308, %v592, 0
        %617 = vmatpush.msra.mxu0 0.0
        %618 = vmatpush.msra.mxu0 0.0
        %619 = vmatpush.msra.mxu0 0.0
        %620 = vmatpush.msra.mxu0 0.0
        %621 = vmatpush.msra.mxu0 0.0
        %622 = vmatpush.msra.mxu0 0.0
        %623 = vmatpush.msra.mxu0 0.0
        %624 = vmatpush.msra.mxu0 0.0
        %625 = vmatpush.msra.mxu0 0.0
        %626 = vmatpush.msra.mxu0 0.0
        %627 = vmatpush.msra.mxu0 0.0
        %628 = vmatpush.msra.mxu0 0.0
        %629 = vmatpush.msra.mxu0 0.0
        %630 = vmatpush.msra.mxu0 0.0
        %631 = vmatpush.msra.mxu0 %v307
        %632 = vmatpush.msra.mxu0 %v306
        %633 = vmatmul.f32.gmra.mxu0 %v594
        %v634 = vpop.f32.mrf.mxu0
        %v635 = vadd.f32 0.0, %v634
        %636 = vmatmul.f32.gmra.mxu0 %v597
        %v637 = vpop.f32.mrf.mxu0
        %v638 = vadd.f32 0.0, %v637
        %639 = vmatmul.f32.gmra.mxu0 %v600
        %v640 = vpop.f32.mrf.mxu0
        %v641 = vadd.f32 0.0, %v640
        %642 = vmatmul.f32.gmra.mxu0 %v603
        %v643 = vpop.f32.mrf.mxu0
        %v644 = vadd.f32 0.0, %v643
        %645 = vmatmul.f32.gmra.mxu0 %v606
        %v646 = vpop.f32.mrf.mxu0
        %v647 = vadd.f32 0.0, %v646
        %648 = vmatmul.f32.gmra.mxu0 %v609
        %v649 = vpop.f32.mrf.mxu0
        %v650 = vadd.f32 0.0, %v649
        %651 = vmatmul.f32.gmra.mxu0 %v612
        %v652 = vpop.f32.mrf.mxu0
        %v653 = vadd.f32 0.0, %v652
        %654 = vmatmul.f32.gmra.mxu0 %v615
        %v655 = vpop.f32.mrf.mxu0
        %v656 = vadd.f32 0.0, %v655
        %657 = vdwg.mxu0
        %v659 = vsel %vm308, %v304, 0
        %v662 = vsel %vm308, %v305, 0
        %664 = vmatpush.msra.mxu0 0.0
        %665 = vmatpush.msra.mxu0 0.0
        %666 = vmatpush.msra.mxu0 0.0
        %667 = vmatpush.msra.mxu0 0.0
        %668 = vmatpush.msra.mxu0 0.0
        %669 = vmatpush.msra.mxu0 0.0
        %670 = vmatpush.msra.mxu0 0.0
        %671 = vmatpush.msra.mxu0 0.0
        %672 = vmatpush.msra.mxu0 0.0
        %673 = vmatpush.msra.mxu0 0.0
        %674 = vmatpush.msra.mxu0 0.0
        %675 = vmatpush.msra.mxu0 0.0
        %676 = vmatpush.msra.mxu0 0.0
        %677 = vmatpush.msra.mxu0 0.0
        %678 = vmatpush.msra.mxu0 %v354
        %679 = vmatpush.msra.mxu0 %v351
        %680 = vmatmul.f32.gmra.mxu0 %v659
        %v681 = vpop.f32.mrf.mxu0
        %v682 = vadd.f32 0.0, %v681
        %683 = vmatmul.f32.gmra.mxu0 %v662
        %v684 = vpop.f32.mrf.mxu0
        %v685 = vadd.f32 0.0, %v684
        %686 = vdwg.mxu0
        %687 = vmatpush.msra.mxu0 0.0
        %688 = vmatpush.msra.mxu0 0.0
        %689 = vmatpush.msra.mxu0 0.0
        %690 = vmatpush.msra.mxu0 0.0
        %691 = vmatpush.msra.mxu0 0.0
        %692 = vmatpush.msra.mxu0 0.0
        %693 = vmatpush.msra.mxu0 0.0
        %694 = vmatpush.msra.mxu0 0.0
        %695 = vmatpush.msra.mxu0 0.0
        %696 = vmatpush.msra.mxu0 0.0
        %697 = vmatpush.msra.mxu0 0.0
        %698 = vmatpush.msra.mxu0 0.0
        %699 = vmatpush.msra.mxu0 0.0
        %700 = vmatpush.msra.mxu0 0.0
        %701 = vmatpush.msra.mxu0 %v419
        %702 = vmatpush.msra.mxu0 %v416
        %703 = vmatmul.f32.gmra.mxu0 %v659
        %v704 = vpop.f32.mrf.mxu0
        %v705 = vadd.f32 0.0, %v704
        %706 = vmatmul.f32.gmra.mxu0 %v662
        %v707 = vpop.f32.mrf.mxu0
        %v708 = vadd.f32 0.0, %v707
        %709 = vdwg.mxu0
        %710 = vmatpush.msra.mxu0 0.0
        %711 = vmatpush.msra.mxu0 0.0
        %712 = vmatpush.msra.mxu0 0.0
        %713 = vmatpush.msra.mxu0 0.0
        %714 = vmatpush.msra.mxu0 0.0
        %715 = vmatpush.msra.mxu0 0.0
        %716 = vmatpush.msra.mxu0 0.0
        %717 = vmatpush.msra.mxu0 0.0
        %718 = vmatpush.msra.mxu0 0.0
        %719 = vmatpush.msra.mxu0 0.0
        %720 = vmatpush.msra.mxu0 0.0
        %721 = vmatpush.msra.mxu0 0.0
        %722 = vmatpush.msra.mxu0 0.0
        %723 = vmatpush.msra.mxu0 0.0
        %724 = vmatpush.msra.mxu0 %v492
        %725 = vmatpush.msra.mxu0 %v489
        %726 = vmatmul.f32.gmra.mxu0 %v659
        %v727 = vpop.f32.mrf.mxu0
        %v728 = vadd.f32 0.0, %v727
        %729 = vmatmul.f32.gmra.mxu0 %v662
        %v730 = vpop.f32.mrf.mxu0
        %v731 = vadd.f32 0.0, %v730
        %732 = vdwg.mxu0
        %733 = vmatpush.msra.mxu0 0.0
        %734 = vmatpush.msra.mxu0 0.0
        %735 = vmatpush.msra.mxu0 0.0
        %736 = vmatpush.msra.mxu0 0.0
        %737 = vmatpush.msra.mxu0 0.0
        %738 = vmatpush.msra.mxu0 0.0
        %739 = vmatpush.msra.mxu0 0.0
        %740 = vmatpush.msra.mxu0 0.0
        %741 = vmatpush.msra.mxu0 0.0
        %742 = vmatpush.msra.mxu0 0.0
        %743 = vmatpush.msra.mxu0 0.0
        %744 = vmatpush.msra.mxu0 0.0
        %745 = vmatpush.msra.mxu0 0.0
        %746 = vmatpush.msra.mxu0 0.0
        %747 = vmatpush.msra.mxu0 %v565
        %748 = vmatpush.msra.mxu0 %v562
        %749 = vmatmul.f32.gmra.mxu0 %v659
        %v750 = vpop.f32.mrf.mxu0
        %v751 = vadd.f32 0.0, %v750
        %752 = vmatmul.f32.gmra.mxu0 %v662
        %v753 = vpop.f32.mrf.mxu0
        %v754 = vadd.f32 0.0, %v753
        %755 = vdwg.mxu0
        %756 = vmatpush.msra.mxu0 0.0
        %757 = vmatpush.msra.mxu0 0.0
        %758 = vmatpush.msra.mxu0 0.0
        %759 = vmatpush.msra.mxu0 0.0
        %760 = vmatpush.msra.mxu0 0.0
        %761 = vmatpush.msra.mxu0 0.0
        %762 = vmatpush.msra.mxu0 0.0
        %763 = vmatpush.msra.mxu0 0.0
        %764 = vmatpush.msra.mxu0 0.0
        %765 = vmatpush.msra.mxu0 0.0
        %766 = vmatpush.msra.mxu0 0.0
        %767 = vmatpush.msra.mxu0 0.0
        %768 = vmatpush.msra.mxu0 0.0
        %769 = vmatpush.msra.mxu0 0.0
        %770 = vmatpush.msra.mxu0 %v638
        %771 = vmatpush.msra.mxu0 %v635
        %772 = vmatmul.f32.gmra.mxu0 %v659
        %v773 = vpop.f32.mrf.mxu0
        %v774 = vadd.f32 0.0, %v773
        %775 = vmatmul.f32.gmra.mxu0 %v662
        %v776 = vpop.f32.mrf.mxu0
        %v777 = vadd.f32 0.0, %v776
        %778 = vdwg.mxu0
        %v779 = vmul.f32 %v682, %v682
        %v780 = vmul.f32 %v685, %v685
        %v781 = vmul.f32 %v705, %v705
        %v782 = vmul.f32 %v708, %v708
        %v783 = vmul.f32 %v682, %v705
        %v784 = vmul.f32 %v685, %v708
        %v785 = vsub.f32 %v728, %v779
        %v786 = vsub.f32 %v731, %v780
        %v787 = vsub.f32 %v751, %v781
        %v788 = vsub.f32 %v754, %v782
        %v789 = vsub.f32 %v774, %v783
        %v790 = vsub.f32 %v777, %v784
        %v791 = vmul.f32 %v783, 2.0
        %v792 = vmul.f32 %v784, 2.0
        %v793 = vadd.f32 %v791, 0.0001
        %v794 = vadd.f32 %v792, 0.0001
        %v795 = vmul.f32 %v789, 2.0
        %v796 = vmul.f32 %v790, 2.0
        %v797 = vadd.f32 %v795, 0.0009
        %v798 = vadd.f32 %v796, 0.0009
        %v799 = vmul.f32 %v793, %v797
        %v800 = vmul.f32 %v794, %v798
        %v801 = vadd.f32 %v779, %v781
        %v802 = vadd.f32 %v780, %v782
        %v803 = vadd.f32 %v801, 0.0001
        %v804 = vadd.f32 %v802, 0.0001
        %v805 = vadd.f32 %v785, %v787
        %v806 = vadd.f32 %v786, %v788
        %v807 = vadd.f32 %v805, 0.0009
        %v808 = vadd.f32 %v806, 0.0009
        %v809 = vmul.f32 %v803, %v807
        %v810 = vmul.f32 %v804, %v808
        %v811 = vrcp.pop %v809
        %v812 = vmul.f32 %v809, %v811
        %v813 = vsub.f32 1.0, %v812
        %v814 = vmul.f32 %v811, %v813
        %v815 = vadd.f32 %v811, %v814
        %vm816 = vweird.f32 %v809
        %vm817 = vweird.f32 %v811
        %vm818 = vmor %vm816, %vm817
        %v819 = vsel %vm818, %v811, %v815
        %v820 = vand.u32 2147483647, %v809
        %vm821 = vcmp.eq.f32.partialorder %v820, 8.507059e+37
        %v822 = vand.u32 %v809, 2147483648
        %v823 = vor.u32 1.1754944e-38, %v822
        %v824 = vsel %vm821, %v823, %v819
        %v825 = vmul.f32 %v799, %v824
        %v826 = vrcp.pop %v810
        %v827 = vmul.f32 %v810, %v826
        %v828 = vsub.f32 1.0, %v827
        %v829 = vmul.f32 %v826, %v828
        %v830 = vadd.f32 %v826, %v829
        %vm831 = vweird.f32 %v810
        %vm832 = vweird.f32 %v826
        %vm833 = vmor %vm831, %vm832
        %v834 = vsel %vm833, %v826, %v830
        %v835 = vand.u32 2147483647, %v810
        %vm836 = vcmp.eq.f32.partialorder %v835, 8.507059e+37
        %v837 = vand.u32 %v810, 2147483648
        %v838 = vor.u32 1.1754944e-38, %v837
        %v839 = vsel %vm836, %v838, %v834
        %v840 = vmul.f32 %v800, %v839
        %v841 = vadd.f32 %v825, 0.0
        %v842 = vadd.f32 %v840, 0.0
        %843 = vmatpush.msra.mxu0 0.0
        %844 = vmatpush.msra.mxu0 0.0
        %845 = vmatpush.msra.mxu0 0.0
        %846 = vmatpush.msra.mxu0 0.0
        %847 = vmatpush.msra.mxu0 0.0
        %848 = vmatpush.msra.mxu0 0.0
        %849 = vmatpush.msra.mxu0 0.0
        %850 = vmatpush.msra.mxu0 0.0
        %851 = vmatpush.msra.mxu0 0.0
        %852 = vmatpush.msra.mxu0 0.0
        %853 = vmatpush.msra.mxu0 0.0
        %854 = vmatpush.msra.mxu0 0.0
        %855 = vmatpush.msra.mxu0 0.0
        %856 = vmatpush.msra.mxu0 0.0
        %857 = vmatpush.msra.mxu0 %v360
        %858 = vmatpush.msra.mxu0 %v357
        %859 = vmatmul.f32.gmra.mxu0 %v659
        %v860 = vpop.f32.mrf.mxu0
        %v861 = vadd.f32 0.0, %v860
        %862 = vmatmul.f32.gmra.mxu0 %v662
        %v863 = vpop.f32.mrf.mxu0
        %v864 = vadd.f32 0.0, %v863
        %865 = vdwg.mxu0
        %866 = vmatpush.msra.mxu0 0.0
        %867 = vmatpush.msra.mxu0 0.0
        %868 = vmatpush.msra.mxu0 0.0
        %869 = vmatpush.msra.mxu0 0.0
        %870 = vmatpush.msra.mxu0 0.0
        %871 = vmatpush.msra.mxu0 0.0
        %872 = vmatpush.msra.mxu0 0.0
        %873 = vmatpush.msra.mxu0 0.0
        %874 = vmatpush.msra.mxu0 0.0
        %875 = vmatpush.msra.mxu0 0.0
        %876 = vmatpush.msra.mxu0 0.0
        %877 = vmatpush.msra.mxu0 0.0
        %878 = vmatpush.msra.mxu0 0.0
        %879 = vmatpush.msra.mxu0 0.0
        %880 = vmatpush.msra.mxu0 %v425
        %881 = vmatpush.msra.mxu0 %v422
        %882 = vmatmul.f32.gmra.mxu0 %v659
        %v883 = vpop.f32.mrf.mxu0
        %v884 = vadd.f32 0.0, %v883
        %885 = vmatmul.f32.gmra.mxu0 %v662
        %v886 = vpop.f32.mrf.mxu0
        %v887 = vadd.f32 0.0, %v886
        %888 = vdwg.mxu0
        %889 = vmatpush.msra.mxu0 0.0
        %890 = vmatpush.msra.mxu0 0.0
        %891 = vmatpush.msra.mxu0 0.0
        %892 = vmatpush.msra.mxu0 0.0
        %893 = vmatpush.msra.mxu0 0.0
        %894 = vmatpush.msra.mxu0 0.0
        %895 = vmatpush.msra.mxu0 0.0
        %896 = vmatpush.msra.mxu0 0.0
        %897 = vmatpush.msra.mxu0 0.0
        %898 = vmatpush.msra.mxu0 0.0
        %899 = vmatpush.msra.mxu0 0.0
        %900 = vmatpush.msra.mxu0 0.0
        %901 = vmatpush.msra.mxu0 0.0
        %902 = vmatpush.msra.mxu0 0.0
        %903 = vmatpush.msra.mxu0 %v498
        %904 = vmatpush.msra.mxu0 %v495
        %905 = vmatmul.f32.gmra.mxu0 %v659
        %v906 = vpop.f32.mrf.mxu0
        %v907 = vadd.f32 0.0, %v906
        %908 = vmatmul.f32.gmra.mxu0 %v662
        %v909 = vpop.f32.mrf.mxu0
        %v910 = vadd.f32 0.0, %v909
        %911 = vdwg.mxu0
        %912 = vmatpush.msra.mxu0 0.0
        %913 = vmatpush.msra.mxu0 0.0
        %914 = vmatpush.msra.mxu0 0.0
        %915 = vmatpush.msra.mxu0 0.0
        %916 = vmatpush.msra.mxu0 0.0
        %917 = vmatpush.msra.mxu0 0.0
        %918 = vmatpush.msra.mxu0 0.0
        %919 = vmatpush.msra.mxu0 0.0
        %920 = vmatpush.msra.mxu0 0.0
        %921 = vmatpush.msra.mxu0 0.0
        %922 = vmatpush.msra.mxu0 0.0
        %923 = vmatpush.msra.mxu0 0.0
        %924 = vmatpush.msra.mxu0 0.0
        %925 = vmatpush.msra.mxu0 0.0
        %926 = vmatpush.msra.mxu0 %v571
        %927 = vmatpush.msra.mxu0 %v568
        %928 = vmatmul.f32.gmra.mxu0 %v659
        %v929 = vpop.f32.mrf.mxu0
        %v930 = vadd.f32 0.0, %v929
        %931 = vmatmul.f32.gmra.mxu0 %v662
        %v932 = vpop.f32.mrf.mxu0
        %v933 = vadd.f32 0.0, %v932
        %934 = vdwg.mxu0
        %935 = vmatpush.msra.mxu0 0.0
        %936 = vmatpush.msra.mxu0 0.0
        %937 = vmatpush.msra.mxu0 0.0
        %938 = vmatpush.msra.mxu0 0.0
        %939 = vmatpush.msra.mxu0 0.0
        %940 = vmatpush.msra.mxu0 0.0
        %941 = vmatpush.msra.mxu0 0.0
        %942 = vmatpush.msra.mxu0 0.0
        %943 = vmatpush.msra.mxu0 0.0
        %944 = vmatpush.msra.mxu0 0.0
        %945 = vmatpush.msra.mxu0 0.0
        %946 = vmatpush.msra.mxu0 0.0
        %947 = vmatpush.msra.mxu0 0.0
        %948 = vmatpush.msra.mxu0 0.0
        %949 = vmatpush.msra.mxu0 %v644
        %950 = vmatpush.msra.mxu0 %v641
        %951 = vmatmul.f32.gmra.mxu0 %v659
        %v952 = vpop.f32.mrf.mxu0
        %v953 = vadd.f32 0.0, %v952
        %954 = vmatmul.f32.gmra.mxu0 %v662
        %v955 = vpop.f32.mrf.mxu0
        %v956 = vadd.f32 0.0, %v955
        %957 = vdwg.mxu0
        %v958 = vmul.f32 %v861, %v861
        %v959 = vmul.f32 %v864, %v864
        %v960 = vmul.f32 %v884, %v884
        %v961 = vmul.f32 %v887, %v887
        %v962 = vmul.f32 %v861, %v884
        %v963 = vmul.f32 %v864, %v887
        %v964 = vsub.f32 %v907, %v958
        %v965 = vsub.f32 %v910, %v959
        %v966 = vsub.f32 %v930, %v960
        %v967 = vsub.f32 %v933, %v961
        %v968 = vsub.f32 %v953, %v962
        %v969 = vsub.f32 %v956, %v963
        %v970 = vmul.f32 %v962, 2.0
        %v971 = vmul.f32 %v963, 2.0
        %v972 = vadd.f32 %v970, 0.0001
        %v973 = vadd.f32 %v971, 0.0001
        %v974 = vmul.f32 %v968, 2.0
        %v975 = vmul.f32 %v969, 2.0
        %v976 = vadd.f32 %v974, 0.0009
        %v977 = vadd.f32 %v975, 0.0009
        %v978 = vmul.f32 %v972, %v976
        %v979 = vmul.f32 %v973, %v977
        %v980 = vadd.f32 %v958, %v960
        %v981 = vadd.f32 %v959, %v961
        %v982 = vadd.f32 %v980, 0.0001
        %v983 = vadd.f32 %v981, 0.0001
        %v984 = vadd.f32 %v964, %v966
        %v985 = vadd.f32 %v965, %v967
        %v986 = vadd.f32 %v984, 0.0009
        %v987 = vadd.f32 %v985, 0.0009
        %v988 = vmul.f32 %v982, %v986
        %v989 = vmul.f32 %v983, %v987
        %v990 = vrcp.pop %v988
        %v991 = vmul.f32 %v988, %v990
        %v992 = vsub.f32 1.0, %v991
        %v993 = vmul.f32 %v990, %v992
        %v994 = vadd.f32 %v990, %v993
        %vm995 = vweird.f32 %v988
        %vm996 = vweird.f32 %v990
        %vm997 = vmor %vm995, %vm996
        %v998 = vsel %vm997, %v990, %v994
        %v999 = vand.u32 2147483647, %v988
        %vm1000 = vcmp.eq.f32.partialorder %v999, 8.507059e+37
        %v1001 = vand.u32 %v988, 2147483648
        %v1002 = vor.u32 1.1754944e-38, %v1001
        %v1003 = vsel %vm1000, %v1002, %v998
        %v1004 = vmul.f32 %v978, %v1003
        %v1005 = vrcp.pop %v989
        %v1006 = vmul.f32 %v989, %v1005
        %v1007 = vsub.f32 1.0, %v1006
        %v1008 = vmul.f32 %v1005, %v1007
        %v1009 = vadd.f32 %v1005, %v1008
        %vm1010 = vweird.f32 %v989
        %vm1011 = vweird.f32 %v1005
        %vm1012 = vmor %vm1010, %vm1011
        %v1013 = vsel %vm1012, %v1005, %v1009
        %v1014 = vand.u32 2147483647, %v989
        %vm1015 = vcmp.eq.f32.partialorder %v1014, 8.507059e+37
        %v1016 = vand.u32 %v989, 2147483648
        %v1017 = vor.u32 1.1754944e-38, %v1016
        %v1018 = vsel %vm1015, %v1017, %v1013
        %v1019 = vmul.f32 %v979, %v1018
        %v1020 = vadd.f32 %v841, %v1004
        %v1021 = vadd.f32 %v842, %v1019
        %1022 = vmatpush.msra.mxu0 0.0
        %1023 = vmatpush.msra.mxu0 0.0
        %1024 = vmatpush.msra.mxu0 0.0
        %1025 = vmatpush.msra.mxu0 0.0
        %1026 = vmatpush.msra.mxu0 0.0
        %1027 = vmatpush.msra.mxu0 0.0
        %1028 = vmatpush.msra.mxu0 0.0
        %1029 = vmatpush.msra.mxu0 0.0
        %1030 = vmatpush.msra.mxu0 0.0
        %1031 = vmatpush.msra.mxu0 0.0
        %1032 = vmatpush.msra.mxu0 0.0
        %1033 = vmatpush.msra.mxu0 0.0
        %1034 = vmatpush.msra.mxu0 0.0
        %1035 = vmatpush.msra.mxu0 0.0
        %1036 = vmatpush.msra.mxu0 %v366
        %1037 = vmatpush.msra.mxu0 %v363
        %1038 = vmatmul.f32.gmra.mxu0 %v659
        %v1039 = vpop.f32.mrf.mxu0
        %v1040 = vadd.f32 0.0, %v1039
        %1041 = vmatmul.f32.gmra.mxu0 %v662
        %v1042 = vpop.f32.mrf.mxu0
        %v1043 = vadd.f32 0.0, %v1042
        %1044 = vdwg.mxu0
        %1045 = vmatpush.msra.mxu0 0.0
        %1046 = vmatpush.msra.mxu0 0.0
        %1047 = vmatpush.msra.mxu0 0.0
        %1048 = vmatpush.msra.mxu0 0.0
        %1049 = vmatpush.msra.mxu0 0.0
        %1050 = vmatpush.msra.mxu0 0.0
        %1051 = vmatpush.msra.mxu0 0.0
        %1052 = vmatpush.msra.mxu0 0.0
        %1053 = vmatpush.msra.mxu0 0.0
        %1054 = vmatpush.msra.mxu0 0.0
        %1055 = vmatpush.msra.mxu0 0.0
        %1056 = vmatpush.msra.mxu0 0.0
        %1057 = vmatpush.msra.mxu0 0.0
        %1058 = vmatpush.msra.mxu0 0.0
        %1059 = vmatpush.msra.mxu0 %v431
        %1060 = vmatpush.msra.mxu0 %v428
        %1061 = vmatmul.f32.gmra.mxu0 %v659
        %v1062 = vpop.f32.mrf.mxu0
        %v1063 = vadd.f32 0.0, %v1062
        %1064 = vmatmul.f32.gmra.mxu0 %v662
        %v1065 = vpop.f32.mrf.mxu0
        %v1066 = vadd.f32 0.0, %v1065
        %1067 = vdwg.mxu0
        %1068 = vmatpush.msra.mxu0 0.0
        %1069 = vmatpush.msra.mxu0 0.0
        %1070 = vmatpush.msra.mxu0 0.0
        %1071 = vmatpush.msra.mxu0 0.0
        %1072 = vmatpush.msra.mxu0 0.0
        %1073 = vmatpush.msra.mxu0 0.0
        %1074 = vmatpush.msra.mxu0 0.0
        %1075 = vmatpush.msra.mxu0 0.0
        %1076 = vmatpush.msra.mxu0 0.0
        %1077 = vmatpush.msra.mxu0 0.0
        %1078 = vmatpush.msra.mxu0 0.0
        %1079 = vmatpush.msra.mxu0 0.0
        %1080 = vmatpush.msra.mxu0 0.0
        %1081 = vmatpush.msra.mxu0 0.0
        %1082 = vmatpush.msra.mxu0 %v504
        %1083 = vmatpush.msra.mxu0 %v501
        %1084 = vmatmul.f32.gmra.mxu0 %v659
        %v1085 = vpop.f32.mrf.mxu0
        %v1086 = vadd.f32 0.0, %v1085
        %1087 = vmatmul.f32.gmra.mxu0 %v662
        %v1088 = vpop.f32.mrf.mxu0
        %v1089 = vadd.f32 0.0, %v1088
        %1090 = vdwg.mxu0
        %1091 = vmatpush.msra.mxu0 0.0
        %1092 = vmatpush.msra.mxu0 0.0
        %1093 = vmatpush.msra.mxu0 0.0
        %1094 = vmatpush.msra.mxu0 0.0
        %1095 = vmatpush.msra.mxu0 0.0
        %1096 = vmatpush.msra.mxu0 0.0
        %1097 = vmatpush.msra.mxu0 0.0
        %1098 = vmatpush.msra.mxu0 0.0
        %1099 = vmatpush.msra.mxu0 0.0
        %1100 = vmatpush.msra.mxu0 0.0
        %1101 = vmatpush.msra.mxu0 0.0
        %1102 = vmatpush.msra.mxu0 0.0
        %1103 = vmatpush.msra.mxu0 0.0
        %1104 = vmatpush.msra.mxu0 0.0
        %1105 = vmatpush.msra.mxu0 %v577
        %1106 = vmatpush.msra.mxu0 %v574
        %1107 = vmatmul.f32.gmra.mxu0 %v659
        %v1108 = vpop.f32.mrf.mxu0
        %v1109 = vadd.f32 0.0, %v1108
        %1110 = vmatmul.f32.gmra.mxu0 %v662
        %v1111 = vpop.f32.mrf.mxu0
        %v1112 = vadd.f32 0.0, %v1111
        %1113 = vdwg.mxu0
        %1114 = vmatpush.msra.mxu0 0.0
        %1115 = vmatpush.msra.mxu0 0.0
        %1116 = vmatpush.msra.mxu0 0.0
        %1117 = vmatpush.msra.mxu0 0.0
        %1118 = vmatpush.msra.mxu0 0.0
        %1119 = vmatpush.msra.mxu0 0.0
        %1120 = vmatpush.msra.mxu0 0.0
        %1121 = vmatpush.msra.mxu0 0.0
        %1122 = vmatpush.msra.mxu0 0.0
        %1123 = vmatpush.msra.mxu0 0.0
        %1124 = vmatpush.msra.mxu0 0.0
        %1125 = vmatpush.msra.mxu0 0.0
        %1126 = vmatpush.msra.mxu0 0.0
        %1127 = vmatpush.msra.mxu0 0.0
        %1128 = vmatpush.msra.mxu0 %v650
        %1129 = vmatpush.msra.mxu0 %v647
        %1130 = vmatmul.f32.gmra.mxu0 %v659
        %v1131 = vpop.f32.mrf.mxu0
        %v1132 = vadd.f32 0.0, %v1131
        %1133 = vmatmul.f32.gmra.mxu0 %v662
        %v1134 = vpop.f32.mrf.mxu0
        %v1135 = vadd.f32 0.0, %v1134
        %1136 = vdwg.mxu0
        %v1137 = vmul.f32 %v1040, %v1040
        %v1138 = vmul.f32 %v1043, %v1043
        %v1139 = vmul.f32 %v1063, %v1063
        %v1140 = vmul.f32 %v1066, %v1066
        %v1141 = vmul.f32 %v1040, %v1063
        %v1142 = vmul.f32 %v1043, %v1066
        %v1143 = vsub.f32 %v1086, %v1137
        %v1144 = vsub.f32 %v1089, %v1138
        %v1145 = vsub.f32 %v1109, %v1139
        %v1146 = vsub.f32 %v1112, %v1140
        %v1147 = vsub.f32 %v1132, %v1141
        %v1148 = vsub.f32 %v1135, %v1142
        %v1149 = vmul.f32 %v1141, 2.0
        %v1150 = vmul.f32 %v1142, 2.0
        %v1151 = vadd.f32 %v1149, 0.0001
        %v1152 = vadd.f32 %v1150, 0.0001
        %v1153 = vmul.f32 %v1147, 2.0
        %v1154 = vmul.f32 %v1148, 2.0
        %v1155 = vadd.f32 %v1153, 0.0009
        %v1156 = vadd.f32 %v1154, 0.0009
        %v1157 = vmul.f32 %v1151, %v1155
        %v1158 = vmul.f32 %v1152, %v1156
        %v1159 = vadd.f32 %v1137, %v1139
        %v1160 = vadd.f32 %v1138, %v1140
        %v1161 = vadd.f32 %v1159, 0.0001
        %v1162 = vadd.f32 %v1160, 0.0001
        %v1163 = vadd.f32 %v1143, %v1145
        %v1164 = vadd.f32 %v1144, %v1146
        %v1165 = vadd.f32 %v1163, 0.0009
        %v1166 = vadd.f32 %v1164, 0.0009
        %v1167 = vmul.f32 %v1161, %v1165
        %v1168 = vmul.f32 %v1162, %v1166
        %v1169 = vrcp.pop %v1167
        %v1170 = vmul.f32 %v1167, %v1169
        %v1171 = vsub.f32 1.0, %v1170
        %v1172 = vmul.f32 %v1169, %v1171
        %v1173 = vadd.f32 %v1169, %v1172
        %vm1174 = vweird.f32 %v1167
        %vm1175 = vweird.f32 %v1169
        %vm1176 = vmor %vm1174, %vm1175
        %v1177 = vsel %vm1176, %v1169, %v1173
        %v1178 = vand.u32 2147483647, %v1167
        %vm1179 = vcmp.eq.f32.partialorder %v1178, 8.507059e+37
        %v1180 = vand.u32 %v1167, 2147483648
        %v1181 = vor.u32 1.1754944e-38, %v1180
        %v1182 = vsel %vm1179, %v1181, %v1177
        %v1183 = vmul.f32 %v1157, %v1182
        %v1184 = vrcp.pop %v1168
        %v1185 = vmul.f32 %v1168, %v1184
        %v1186 = vsub.f32 1.0, %v1185
        %v1187 = vmul.f32 %v1184, %v1186
        %v1188 = vadd.f32 %v1184, %v1187
        %vm1189 = vweird.f32 %v1168
        %vm1190 = vweird.f32 %v1184
        %vm1191 = vmor %vm1189, %vm1190
        %v1192 = vsel %vm1191, %v1184, %v1188
        %v1193 = vand.u32 2147483647, %v1168
        %vm1194 = vcmp.eq.f32.partialorder %v1193, 8.507059e+37
        %v1195 = vand.u32 %v1168, 2147483648
        %v1196 = vor.u32 1.1754944e-38, %v1195
        %v1197 = vsel %vm1194, %v1196, %v1192
        %v1198 = vmul.f32 %v1158, %v1197
        %v1199 = vadd.f32 %v1020, %v1183
        %v1200 = vadd.f32 %v1021, %v1198
        %1201 = vmatpush.msra.mxu0 0.0
        %1202 = vmatpush.msra.mxu0 0.0
        %1203 = vmatpush.msra.mxu0 0.0
        %1204 = vmatpush.msra.mxu0 0.0
        %1205 = vmatpush.msra.mxu0 0.0
        %1206 = vmatpush.msra.mxu0 0.0
        %1207 = vmatpush.msra.mxu0 0.0
        %1208 = vmatpush.msra.mxu0 0.0
        %1209 = vmatpush.msra.mxu0 0.0
        %1210 = vmatpush.msra.mxu0 0.0
        %1211 = vmatpush.msra.mxu0 0.0
        %1212 = vmatpush.msra.mxu0 0.0
        %1213 = vmatpush.msra.mxu0 0.0
        %1214 = vmatpush.msra.mxu0 0.0
        %1215 = vmatpush.msra.mxu0 %v372
        %1216 = vmatpush.msra.mxu0 %v369
        %1217 = vmatmul.f32.gmra.mxu0 %v659
        %v1218 = vpop.f32.mrf.mxu0
        %v1219 = vadd.f32 0.0, %v1218
        %1220 = vmatmul.f32.gmra.mxu0 %v662
        %v1221 = vpop.f32.mrf.mxu0
        %v1222 = vadd.f32 0.0, %v1221
        %1223 = vdwg.mxu0
        %1224 = vmatpush.msra.mxu0 0.0
        %1225 = vmatpush.msra.mxu0 0.0
        %1226 = vmatpush.msra.mxu0 0.0
        %1227 = vmatpush.msra.mxu0 0.0
        %1228 = vmatpush.msra.mxu0 0.0
        %1229 = vmatpush.msra.mxu0 0.0
        %1230 = vmatpush.msra.mxu0 0.0
        %1231 = vmatpush.msra.mxu0 0.0
        %1232 = vmatpush.msra.mxu0 0.0
        %1233 = vmatpush.msra.mxu0 0.0
        %1234 = vmatpush.msra.mxu0 0.0
        %1235 = vmatpush.msra.mxu0 0.0
        %1236 = vmatpush.msra.mxu0 0.0
        %1237 = vmatpush.msra.mxu0 0.0
        %1238 = vmatpush.msra.mxu0 %v437
        %1239 = vmatpush.msra.mxu0 %v434
        %1240 = vmatmul.f32.gmra.mxu0 %v659
        %v1241 = vpop.f32.mrf.mxu0
        %v1242 = vadd.f32 0.0, %v1241
        %1243 = vmatmul.f32.gmra.mxu0 %v662
        %v1244 = vpop.f32.mrf.mxu0
        %v1245 = vadd.f32 0.0, %v1244
        %1246 = vdwg.mxu0
        %1247 = vmatpush.msra.mxu0 0.0
        %1248 = vmatpush.msra.mxu0 0.0
        %1249 = vmatpush.msra.mxu0 0.0
        %1250 = vmatpush.msra.mxu0 0.0
        %1251 = vmatpush.msra.mxu0 0.0
        %1252 = vmatpush.msra.mxu0 0.0
        %1253 = vmatpush.msra.mxu0 0.0
        %1254 = vmatpush.msra.mxu0 0.0
        %1255 = vmatpush.msra.mxu0 0.0
        %1256 = vmatpush.msra.mxu0 0.0
        %1257 = vmatpush.msra.mxu0 0.0
        %1258 = vmatpush.msra.mxu0 0.0
        %1259 = vmatpush.msra.mxu0 0.0
        %1260 = vmatpush.msra.mxu0 0.0
        %1261 = vmatpush.msra.mxu0 %v510
        %1262 = vmatpush.msra.mxu0 %v507
        %1263 = vmatmul.f32.gmra.mxu0 %v659
        %v1264 = vpop.f32.mrf.mxu0
        %v1265 = vadd.f32 0.0, %v1264
        %1266 = vmatmul.f32.gmra.mxu0 %v662
        %v1267 = vpop.f32.mrf.mxu0
        %v1268 = vadd.f32 0.0, %v1267
        %1269 = vdwg.mxu0
        %1270 = vmatpush.msra.mxu0 0.0
        %1271 = vmatpush.msra.mxu0 0.0
        %1272 = vmatpush.msra.mxu0 0.0
        %1273 = vmatpush.msra.mxu0 0.0
        %1274 = vmatpush.msra.mxu0 0.0
        %1275 = vmatpush.msra.mxu0 0.0
        %1276 = vmatpush.msra.mxu0 0.0
        %1277 = vmatpush.msra.mxu0 0.0
        %1278 = vmatpush.msra.mxu0 0.0
        %1279 = vmatpush.msra.mxu0 0.0
        %1280 = vmatpush.msra.mxu0 0.0
        %1281 = vmatpush.msra.mxu0 0.0
        %1282 = vmatpush.msra.mxu0 0.0
        %1283 = vmatpush.msra.mxu0 0.0
        %1284 = vmatpush.msra.mxu0 %v583
        %1285 = vmatpush.msra.mxu0 %v580
        %1286 = vmatmul.f32.gmra.mxu0 %v659
        %v1287 = vpop.f32.mrf.mxu0
        %v1288 = vadd.f32 0.0, %v1287
        %1289 = vmatmul.f32.gmra.mxu0 %v662
        %v1290 = vpop.f32.mrf.mxu0
        %v1291 = vadd.f32 0.0, %v1290
        %1292 = vdwg.mxu0
        %1293 = vmatpush.msra.mxu0 0.0
        %1294 = vmatpush.msra.mxu0 0.0
        %1295 = vmatpush.msra.mxu0 0.0
        %1296 = vmatpush.msra.mxu0 0.0
        %1297 = vmatpush.msra.mxu0 0.0
        %1298 = vmatpush.msra.mxu0 0.0
        %1299 = vmatpush.msra.mxu0 0.0
        %1300 = vmatpush.msra.mxu0 0.0
        %1301 = vmatpush.msra.mxu0 0.0
        %1302 = vmatpush.msra.mxu0 0.0
        %1303 = vmatpush.msra.mxu0 0.0
        %1304 = vmatpush.msra.mxu0 0.0
        %1305 = vmatpush.msra.mxu0 0.0
        %1306 = vmatpush.msra.mxu0 0.0
        %1307 = vmatpush.msra.mxu0 %v656
        %1308 = vmatpush.msra.mxu0 %v653
        %1309 = vmatmul.f32.gmra.mxu0 %v659
        %v1310 = vpop.f32.mrf.mxu0
        %v1311 = vadd.f32 0.0, %v1310
        %1312 = vmatmul.f32.gmra.mxu0 %v662
        %v1313 = vpop.f32.mrf.mxu0
        %v1314 = vadd.f32 0.0, %v1313
        %1315 = vdwg.mxu0
        %v1316 = vmul.f32 %v1219, %v1219
        %v1317 = vmul.f32 %v1222, %v1222
        %v1318 = vmul.f32 %v1242, %v1242
        %v1319 = vmul.f32 %v1245, %v1245
        %v1320 = vmul.f32 %v1219, %v1242
        %v1321 = vmul.f32 %v1222, %v1245
        %v1322 = vsub.f32 %v1265, %v1316
        %v1323 = vsub.f32 %v1268, %v1317
        %v1324 = vsub.f32 %v1288, %v1318
        %v1325 = vsub.f32 %v1291, %v1319
        %v1326 = vsub.f32 %v1311, %v1320
        %v1327 = vsub.f32 %v1314, %v1321
        %v1328 = vmul.f32 %v1320, 2.0
        %v1329 = vmul.f32 %v1321, 2.0
        %v1330 = vadd.f32 %v1328, 0.0001
        %v1331 = vadd.f32 %v1329, 0.0001
        %v1332 = vmul.f32 %v1326, 2.0
        %v1333 = vmul.f32 %v1327, 2.0
        %v1334 = vadd.f32 %v1332, 0.0009
        %v1335 = vadd.f32 %v1333, 0.0009
        %v1336 = vmul.f32 %v1330, %v1334
        %v1337 = vmul.f32 %v1331, %v1335
        %v1338 = vadd.f32 %v1316, %v1318
        %v1339 = vadd.f32 %v1317, %v1319
        %v1340 = vadd.f32 %v1338, 0.0001
        %v1341 = vadd.f32 %v1339, 0.0001
        %v1342 = vadd.f32 %v1322, %v1324
        %v1343 = vadd.f32 %v1323, %v1325
        %v1344 = vadd.f32 %v1342, 0.0009
        %v1345 = vadd.f32 %v1343, 0.0009
        %v1346 = vmul.f32 %v1340, %v1344
        %v1347 = vmul.f32 %v1341, %v1345
        %v1348 = vrcp.pop %v1346
        %v1349 = vmul.f32 %v1346, %v1348
        %v1350 = vsub.f32 1.0, %v1349
        %v1351 = vmul.f32 %v1348, %v1350
        %v1352 = vadd.f32 %v1348, %v1351
        %vm1353 = vweird.f32 %v1346
        %vm1354 = vweird.f32 %v1348
        %vm1355 = vmor %vm1353, %vm1354
        %v1356 = vsel %vm1355, %v1348, %v1352
        %v1357 = vand.u32 2147483647, %v1346
        %vm1358 = vcmp.eq.f32.partialorder %v1357, 8.507059e+37
        %v1359 = vand.u32 %v1346, 2147483648
        %v1360 = vor.u32 1.1754944e-38, %v1359
        %v1361 = vsel %vm1358, %v1360, %v1356
        %v1362 = vmul.f32 %v1336, %v1361
        %v1363 = vrcp.pop %v1347
        %v1364 = vmul.f32 %v1347, %v1363
        %v1365 = vsub.f32 1.0, %v1364
        %v1366 = vmul.f32 %v1363, %v1365
        %v1367 = vadd.f32 %v1363, %v1366
        %vm1368 = vweird.f32 %v1347
        %vm1369 = vweird.f32 %v1363
        %vm1370 = vmor %vm1368, %vm1369
        %v1371 = vsel %vm1370, %v1363, %v1367
        %v1372 = vand.u32 2147483647, %v1347
        %vm1373 = vcmp.eq.f32.partialorder %v1372, 8.507059e+37
        %v1374 = vand.u32 %v1347, 2147483648
        %v1375 = vor.u32 1.1754944e-38, %v1374
        %v1376 = vsel %vm1373, %v1375, %v1371
        %v1377 = vmul.f32 %v1337, %v1376
        %v1378 = vadd.f32 %v1199, %v1362
        %v1379 = vadd.f32 %v1200, %v1377
        %v1380 = vsel %vm308, %v1378, 0.0
        %v1381 = vsel %vm308, %v1379, 0.0
        %v1382 = vadd.f32 %v1380, %v1381
        %1383 = vadd.xlane.f32.xlu0 %v1382
        %v1384 = vpop.xlane.xlu0 %1383
        %v1385 = vrot.slane %v1384, 4
        %v1386 = vadd.f32 %v1384, %v1385
        %v1387 = vrot.slane %v1386, 2
        %v1388 = vadd.f32 %v1386, %v1387
        %v1389 = vrot.slane %v1388, 1
        %v1390 = vadd.f32 %v1388, %v1389
        %s1391 = vtos %v1390
        %v1392 = vstv %s1391
        %1393 = vst [vmem:[%s287] sm:$0xff] %v1392
        %s1394 = sand.u32 %s122, 1
        %s1395 = scalar_lea.sflag [#allocation4], %s1394
        %s1396 = sand.u32 %s122, 1
        %s1397 = smul.addr %s1396, 8
        %s1398 = scalar_lea.vmem [#allocation9], %s1397
        // Predicated region
        $region53: #{tpu_custom_call.1} parent=35 // pred_check
          %p1399 = pneg %p132
        $region54: #{tpu_custom_call.1} parent=35 // pred_check_branch
          %1401 = sbr.rel (%p1399) target = $region56
        $region55: #{tpu_custom_call.1} parent=35 // pred_region
          %1403 = vsyncadd %s1395, 0
          %s1404 = smul.addr %s20, 8
          %s1405 = scalar_lea.hbm %s4, %s1404
          %s1407 = sshll.u32 %s1398, 4
          %s1408 = int_to_ptr.vmem [resolvable:$true] %s1407
          %s1409 = sshll.u32 %s1405, 4
          %s1410 = int_to_ptr.hbm [resolvable:$true] %s1409
          %1412 = dma.vmem_to_hbm [thread:$0]  %s1408, 128, %s1410, %s1395
        $region56: #{tpu_custom_call.1} parent=35 // pred_fallthru
          _
      $region36: #{tpu_custom_call.1} parent=5 // pred_fallthru
        _
      %p1413 = scmp.le.s32.totalorder 2, %s15
      // Predicated region
      $region57: #{tpu_custom_call.1} parent=5 // pred_check
        %p1414 = pneg %p1413
      $region58: #{tpu_custom_call.1} parent=5 // pred_check_branch
        %1416 = sbr.rel (%p1414) target = $region60
      $region59: #{tpu_custom_call.1} parent=5 // pred_region
        %s1417 = ssub.s32 %s15, 2
        // Predicated region
        $region61: #{tpu_custom_call.1} parent=59 // pred_check
          %p1418 = pneg %p138
        $region62: #{tpu_custom_call.1} parent=59 // pred_check_branch
          %1420 = sbr.rel (%p1418) target = $region64
        $region63: #{tpu_custom_call.1} parent=59 // pred_region
          %s1421 = sand.u32 %s123, 1
          %s1422 = scalar_lea.sflag [#allocation4], %s1421
          %s1423 = sand.u32 %s123, 1
          %s1424 = smul.addr %s1423, 8
          %s1425 = scalar_lea.vmem [#allocation9], %s1424
          %1427 = dma.done %s1422, 128
        $region64: #{tpu_custom_call.1} parent=59 // pred_fallthru
          _
      $region60: #{tpu_custom_call.1} parent=5 // pred_fallthru
        _
    $region6: #{tpu_custom_call.1} parent=1 // loop_footer
      %s19 = sadd.s32 1, %s15
    $region7: #{tpu_custom_call.1} parent=1 // loop_footer_branch
      %14 = sbr.rel target = $region3
    $region8: #{tpu_custom_call.1} parent=1 // loop_exit
      _
    %1428 = vsyncpa [#allocation3], 1
    %s1429 = scalar_lea.sflag [#allocation3], 1
    %1430 = vsyncpa %s1429, 1
    %1431 = vsyncpa [#allocation6], 1
    %1432 = vsyncpa [#allocation4], 1
    %s1433 = scalar_lea.sflag [#allocation4], 1
    %1434 = vsyncpa %s1433, 1

</llo_original>
